<compile_context>
chip_gen: v6e
topology: v6e:2x2x1
jax: 0.10.0
libtpu: 0.0.40
codegen_flags: <defaults>
</compile_context>

<pallas_src>
import functools

import jax
import jax.numpy as jnp
from jax.experimental import pallas as pl
from jax.experimental.pallas import tpu as pltpu

NODE_KEYS = ["paper", "author"]
EDGE_KEYS = [
    ("paper", "subject", "paper"),
    ("author", "Institute", "author"),
    ("paper", "from", "author"),
    ("author", "write", "paper"),
]

LANE = 128
# Safe on every generation (v7x has only 64 MiB physical VMEM per TensorCore).
VMEM_LIMIT = 32 * 1024 * 1024


def _round_up(x, m):
    return ((x + m - 1) // m) * m


def _pick_tile(total, target, step):
    """Largest multiple of `step` <= target that divides `total`."""
    t = min(target, total)
    while total % t:
        t -= step
    return t


def _pad2(a, rows, cols):
    return jnp.pad(a, ((0, rows - a.shape[0]), (0, cols - a.shape[1])))


def _dst_relations(t):
    return [ek for ek in EDGE_KEYS if ek[2] == t]


# ----------------------------------------------------------------------------
# Fused heterogeneous GNN layer kernel (2 relations unrolled):
#   out = relu( h_dst @ W_self + b + (A0 @ h_src0) @ W0 + (A1 @ h_src1) @ W1 )
# grid = (M tiles ["parallel"], Ns chunks ["arbitrary"]), f32 VMEM accumulator,
# bf16 MXU operands, bf16 lane-dense output.
# ----------------------------------------------------------------------------
def _fused_gnn_layer_kernel(hdst_ref, wself_ref, bias_ref,
                            adj0_ref, hsrc0_ref, wrel0_ref,
                            adj1_ref, hsrc1_ref, wrel1_ref,
                            out_ref, acc_ref):
    s = pl.program_id(1)

    @pl.when(s == 0)
    def _init():
        acc_ref[...] = (
            jnp.dot(hdst_ref[...], wself_ref[...],
                    preferred_element_type=jnp.float32)
            + bias_ref[...]
        )

    msg0 = jnp.dot(adj0_ref[...], hsrc0_ref[...],
                   preferred_element_type=jnp.float32)
    acc_ref[...] += jnp.dot(msg0.astype(jnp.bfloat16), wrel0_ref[...],
                            preferred_element_type=jnp.float32)

    msg1 = jnp.dot(adj1_ref[...], hsrc1_ref[...],
                   preferred_element_type=jnp.float32)
    acc_ref[...] += jnp.dot(msg1.astype(jnp.bfloat16), wrel1_ref[...],
                            preferred_element_type=jnp.float32)

    @pl.when(s == pl.num_programs(1) - 1)
    def _fin():
        out_ref[...] = jnp.maximum(acc_ref[...], 0.0).astype(out_ref.dtype)


def fused_gnn_layer(hdst, wself, bias, adj0, hsrc0, wrel0, adj1, hsrc1, wrel1,
                    *, tm_target=128, tns_target=512):
    Np, Hp = hdst.shape
    Ns = adj0.shape[1]
    tm = _pick_tile(Np, tm_target, LANE)
    tns = _pick_tile(Ns, tns_target, LANE)
    return pl.pallas_call(
        _fused_gnn_layer_kernel,
        out_shape=jax.ShapeDtypeStruct((Np, Hp), jnp.bfloat16),
        grid=(Np // tm, Ns // tns),
        in_specs=[
            pl.BlockSpec((tm, Hp), lambda i, s: (i, 0)),     # h_dst
            pl.BlockSpec((Hp, Hp), lambda i, s: (0, 0)),     # W_self
            pl.BlockSpec((1, Hp), lambda i, s: (0, 0)),      # bias
            pl.BlockSpec((tm, tns), lambda i, s: (i, s)),    # A0 chunk
            pl.BlockSpec((tns, Hp), lambda i, s: (s, 0)),    # h_src0 chunk
            pl.BlockSpec((Hp, Hp), lambda i, s: (0, 0)),     # W_rel0
            pl.BlockSpec((tm, tns), lambda i, s: (i, s)),    # A1 chunk
            pl.BlockSpec((tns, Hp), lambda i, s: (s, 0)),    # h_src1 chunk
            pl.BlockSpec((Hp, Hp), lambda i, s: (0, 0)),     # W_rel1
        ],
        out_specs=pl.BlockSpec((tm, Hp), lambda i, s: (i, 0)),
        scratch_shapes=[pltpu.VMEM((tm, Hp), jnp.float32)],
        compiler_params=pltpu.CompilerParams(
            dimension_semantics=("parallel", "arbitrary"),
            vmem_limit_bytes=VMEM_LIMIT),
    )(hdst, wself, bias, adj0, hsrc0, wrel0, adj1, hsrc1, wrel1)


# ----------------------------------------------------------------------------
# Fused "concat" linear for EdgePred: relu(h_src @ W_src + h_dst @ W_dst + b)
# (never materializes the [E, 2H] concat)
# ----------------------------------------------------------------------------
def _dual_matmul_kernel(a_ref, wa_ref, c_ref, wc_ref, bias_ref, o_ref):
    acc = jnp.dot(a_ref[...], wa_ref[...], preferred_element_type=jnp.float32)
    acc = acc + jnp.dot(c_ref[...], wc_ref[...],
                        preferred_element_type=jnp.float32)
    acc = acc + bias_ref[...]
    o_ref[...] = jnp.maximum(acc, 0.0).astype(o_ref.dtype)


def pallas_dual_matmul_relu(a, wa, c, wc, bias, bm=256):
    """a, c: [E, Kp] bf16 (already lane-padded); wa, wc: [K, N] f32 params."""
    M, Kp = a.shape
    K, N = wa.shape
    Np = _round_up(N, LANE)
    tm = min(bm, _round_up(M, 8))
    Mp = _round_up(M, tm)

    a_p = jnp.pad(a, ((0, Mp - M), (0, 0)))
    c_p = jnp.pad(c, ((0, Mp - M), (0, 0)))
    wa_p = _pad2(wa.astype(jnp.bfloat16), Kp, Np)
    wc_p = _pad2(wc.astype(jnp.bfloat16), Kp, Np)
    bias_p = jnp.pad(bias.astype(jnp.float32), (0, Np - N)).reshape(1, Np)

    out = pl.pallas_call(
        _dual_matmul_kernel,
        out_shape=jax.ShapeDtypeStruct((Mp, Np), jnp.float32),
        grid=(Mp // tm,),
        in_specs=[
            pl.BlockSpec((tm, Kp), lambda i: (i, 0)),
            pl.BlockSpec((Kp, Np), lambda i: (0, 0)),
            pl.BlockSpec((tm, Kp), lambda i: (i, 0)),
            pl.BlockSpec((Kp, Np), lambda i: (0, 0)),
            pl.BlockSpec((1, Np), lambda i: (0, 0)),
        ],
        out_specs=pl.BlockSpec((tm, Np), lambda i: (i, 0)),
        compiler_params=pltpu.CompilerParams(
            dimension_semantics=("parallel",),
            vmem_limit_bytes=VMEM_LIMIT),
    )(a_p, wa_p, c_p, wc_p, bias_p)
    return out[:M, :N]


# ----------------------------------------------------------------------------
# Masked gumbel softmax kernel (mask = dense > 0); gumbel noise is an input.
# ----------------------------------------------------------------------------
def _masked_gumbel_softmax_kernel(dense_ref, noise_ref, o_ref, *, tau):
    d = dense_ref[...]
    z = jnp.where(d > 0.0, (d + noise_ref[...]) * (1.0 / tau), -1e9)
    m = jnp.max(z, axis=-1, keepdims=True)
    e = jnp.exp(z - m)
    s = jnp.sum(e, axis=-1, keepdims=True)
    o_ref[...] = (e / s).astype(o_ref.dtype)


def pallas_masked_gumbel_softmax(dense, noise, tau):
    n0, n1 = dense.shape
    tr = min(256, _round_up(n0, 8))
    N0p = _round_up(n0, tr)
    N1p = _round_up(n1, LANE)
    dense_p = jnp.pad(dense.astype(jnp.float32), ((0, N0p - n0), (0, N1p - n1)))
    noise_p = jnp.pad(noise.astype(jnp.float32), ((0, N0p - n0), (0, N1p - n1)))
    kernel = functools.partial(_masked_gumbel_softmax_kernel, tau=float(tau))
    out = pl.pallas_call(
        kernel,
        out_shape=jax.ShapeDtypeStruct((N0p, N1p), jnp.float32),
        grid=(N0p // tr,),
        in_specs=[
            pl.BlockSpec((tr, N1p), lambda i: (i, 0)),
            pl.BlockSpec((tr, N1p), lambda i: (i, 0)),
        ],
        out_specs=pl.BlockSpec((tr, N1p), lambda i: (i, 0)),
        compiler_params=pltpu.CompilerParams(
            dimension_semantics=("parallel",),
            vmem_limit_bytes=VMEM_LIMIT),
    )(dense_p, noise_p)
    return out[:n0, :n1]


def gumbel_softmax(dense, k, tau, key, hard=True):
    noise = jax.random.gumbel(key, dense.shape, jnp.float32)
    soft = pallas_masked_gumbel_softmax(dense, noise, tau)
    # TODO(synk): hard top-k straight-through selection stays in plain JAX;
    # there is no clean Pallas top-k primitive on TPU.
    _, top_idx = jax.lax.top_k(soft, k)
    rows = jnp.arange(dense.shape[0])[:, None]
    hard_t = jnp.zeros_like(soft).at[rows, top_idx].set(1.0)
    if hard:
        return hard_t + soft - jax.lax.stop_gradient(soft)
    return soft


# ----------------------------------------------------------------------------
# Model components
# ----------------------------------------------------------------------------
def init_params(key, x_dim, y_dim, num_layers=2, edge_hidden=256):
    hidden = x_dim  # GNNNodeEmbed.hidden_size
    keys = iter(jax.random.split(key, 64))
    params = {"gnn": {"hidden_size": hidden, "layers": []},
              "edge_pred": {}, "classify": {}}
    for _ in range(num_layers):
        layer = {"w_self": {}, "b": {}, "w_rel": {}}
        for t in NODE_KEYS:
            layer["w_self"][t] = 0.1 * jax.random.normal(next(keys), (hidden, hidden), jnp.float32)
            layer["b"][t] = jnp.zeros((hidden,), jnp.float32)
        for ek in EDGE_KEYS:
            layer["w_rel"][ek] = 0.1 * jax.random.normal(next(keys), (hidden, hidden), jnp.float32)
        params["gnn"]["layers"].append(layer)
    for ek in EDGE_KEYS[:2]:
        params["edge_pred"][ek] = {
            "w1_src": 0.1 * jax.random.normal(next(keys), (hidden, edge_hidden), jnp.float32),
            "w1_dst": 0.1 * jax.random.normal(next(keys), (hidden, edge_hidden), jnp.float32),
            "b1": jnp.zeros((edge_hidden,), jnp.float32),
            "w2": 0.1 * jax.random.normal(next(keys), (edge_hidden, 2), jnp.float32),
            "b2": jnp.zeros((2,), jnp.float32),
        }
    params["classify"]["w"] = 0.1 * jax.random.normal(next(keys), (hidden, y_dim), jnp.float32)
    params["classify"]["b"] = jnp.zeros((y_dim,), jnp.float32)
    return params


def pad_gnn_params(gnn_params, Hp):
    H = gnn_params["hidden_size"]
    padded = []
    for lp in gnn_params["layers"]:
        lp_pad = {"w_self": {}, "b": {}, "w_rel": {}}
        for t in NODE_KEYS:
            lp_pad["w_self"][t] = _pad2(lp["w_self"][t], Hp, Hp).astype(jnp.bfloat16)
            lp_pad["b"][t] = jnp.pad(lp["b"][t], (0, Hp - H)).reshape(1, Hp).astype(jnp.float32)
        for ek in EDGE_KEYS:
            lp_pad["w_rel"][ek] = _pad2(lp["w_rel"][ek], Hp, Hp).astype(jnp.bfloat16)
        padded.append(lp_pad)
    return padded


def build_adjs(edge_index, n_pad, edge_attn):
    """Per relation: bf16 [N_pad, N_pad] dense adjacency (dst rows, src cols)."""
    adjs = {}
    for ek in EDGE_KEYS:
        idx = edge_index[ek]
        num_e = idx.shape[1]
        if edge_attn is not None and ek in edge_attn:
            w = edge_attn[ek].astype(jnp.float32)
        else:
            w = jnp.ones((num_e,), jnp.float32)
        # TODO(synk): dense-adjacency scatter; replace with a CSR gather /
        # segment-sum scalar-prefetch kernel at ogbn-mag scale.
        adj = jnp.zeros((n_pad, n_pad), jnp.float32).at[idx[1], idx[0]].add(w)
        adjs[ek] = adj.astype(jnp.bfloat16)
    return adjs


def gnn_layer_all(h, layer_pad, adjs):
    """Run the fused layer kernel for every node type.

    h: t -> [N_pad, Hp] bf16 (shared padding, so outputs feed the next layer
    as both h_dst and h_src with no extra pad/cast/stack passes)."""
    out = {}
    for t in NODE_KEYS:
        ek0, ek1 = _dst_relations(t)
        out[t] = fused_gnn_layer(
            h[t], layer_pad["w_self"][t], layer_pad["b"][t],
            adjs[ek0], h[ek0[0]], layer_pad["w_rel"][ek0],
            adjs[ek1], h[ek1[0]], layer_pad["w_rel"][ek1])
    return out


def edge_pred_fn(ep_params, h_pad, edge_index):
    out = {}
    for ek in EDGE_KEYS[:2]:
        p = ep_params[ek]
        idx = edge_index[ek]
        # TODO(synk): row gather stays in XLA; an Element/scalar-prefetch gather
        # kernel would avoid materializing the [E, Hp] copies at scale.
        h_src = h_pad[ek[0]][idx[0]]   # already lane-padded bf16
        h_dst = h_pad[ek[2]][idx[1]]
        hid = pallas_dual_matmul_relu(h_src, p["w1_src"], h_dst, p["w1_dst"], p["b1"])
        # Tiny second layer ([E,256]@[256,2]) stays in plain XLA (feedback:
        # a pallas_call + 128-lane padding dwarfs the actual compute).
        out[ek] = hid @ p["w2"] + p["b2"]
    return out


def global_mean_pool(h, batch_idx, num_graphs):
    # G=2 pooling stays in plain XLA (feedback).
    onehot = (batch_idx[None, :] == jnp.arange(num_graphs)[:, None]).astype(jnp.float32)
    sums = onehot @ h.astype(jnp.float32)
    counts = jnp.maximum(jnp.sum(onehot, axis=1, keepdims=True), 1.0)
    return sums / counts


# ----------------------------------------------------------------------------
# Full forward
# ----------------------------------------------------------------------------
def multigraph_forward(params, x, edge_index, batch, index, *, k=5,
                       training=True, rng=None, num_graphs=2):
    gnn = params["gnn"]
    H = gnn["hidden_size"]
    Hp = _round_up(H, LANE)

    node_counts = {t: x[t].shape[0] for t in NODE_KEYS}
    # One shared row padding for every node type so a layer output is directly
    # reusable as the next layer's h_dst AND h_src (no per-layer re-pad).
    n_pad = _round_up(max(node_counts.values()), LANE)

    layers_pad = pad_gnn_params(gnn, Hp)
    h0 = {t: _pad2(x[t].astype(jnp.float32), n_pad, Hp).astype(jnp.bfloat16)
          for t in NODE_KEYS}

    def unpad(h):
        return {t: h[t][:node_counts[t], :H] for t in NODE_KEYS}

    # --- layer 1 without attention (shared by single=True pass and src_multi) ---
    adj_plain = build_adjs(edge_index, n_pad, None)
    h1_plain = gnn_layer_all(h0, layers_pad[0], adj_plain)

    # --- edge prediction + gumbel edge weights ---
    epred = edge_pred_fn(params["edge_pred"], h1_plain, edge_index)

    w_weight = {}
    rng_keys = jax.random.split(rng, len(EDGE_KEYS))
    for i, ek in enumerate(EDGE_KEYS):
        if ek[0] != ek[2]:
            continue
        n = node_counts[ek[0]]
        pred = epred[ek]
        idx = edge_index[ek]
        if n < k:
            w_weight[ek] = jnp.ones_like(pred[:, 0])
            continue
        # TODO(synk): dense scatter of edge logits; CSR at real scale.
        dense = jnp.zeros((n, n), jnp.float32).at[idx[0], idx[1]].add(pred[:, 0])
        dense_hard = gumbel_softmax(dense, k, 1.0, rng_keys[i], hard=True)
        w_weight[ek] = dense_hard[idx[0], idx[1]]

    # --- layer 1 with attention (shared by sub_x_emb and multi_emb) ---
    adj_attn = build_adjs(edge_index, n_pad, w_weight)
    h1_attn = gnn_layer_all(h0, layers_pad[0], adj_attn)

    # --- layer 2 with attention (multi_emb) reuses h1_attn ---
    h2_attn = gnn_layer_all(h1_attn, layers_pad[1], adj_attn)
    multi_emb = unpad(h2_attn)

    multi_embedding_pool = (multi_emb["paper"][index, :]
                            .reshape(1, -1).astype(jnp.float32))
    # Tiny classify head ([1,H]@[H,y_dim]) stays in plain XLA (feedback).
    y_hat = multi_embedding_pool @ params["classify"]["w"] + params["classify"]["b"]

    if not training:
        return y_hat, w_weight

    sub_x_emb = unpad(h1_attn)
    node_embedding_sub = {}
    for t in NODE_KEYS:
        if sub_x_emb[t].shape[0] <= 1:
            node_embedding_sub[t] = sub_x_emb[t]
        else:
            node_embedding_sub[t] = global_mean_pool(sub_x_emb[t], batch[t], num_graphs)

    # --- layer 2 without attention (src_multi) reuses h1_plain ---
    h2_plain = gnn_layer_all(h1_plain, layers_pad[1], adj_plain)
    src_multi = unpad(h2_plain)
    multi_src_embedding_pool = (src_multi["paper"][index, :]
                                .reshape(1, -1).astype(jnp.float32))

    return (y_hat, w_weight, multi_embedding_pool, multi_src_embedding_pool,
            node_embedding_sub)


# ----------------------------------------------------------------------------
if __name__ == "__main__":
    key = jax.random.PRNGKey(0)
    x_dim, y_dim, k = 32, 5, 5
    n_paper, n_author = 16, 12
    num_graphs = 2
    ks = jax.random.split(key, 16)

    x = {
        "paper": jax.random.normal(ks[0], (n_paper, x_dim), jnp.float32),
        "author": jax.random.normal(ks[1], (n_author, x_dim), jnp.float32),
    }

    def rand_edges(kk, e, n_src, n_dst):
        return jnp.stack([
            jax.random.randint(kk, (e,), 0, n_src),
            jax.random.randint(jax.random.fold_in(kk, 1), (e,), 0, n_dst),
        ]).astype(jnp.int32)

    edge_index = {
        EDGE_KEYS[0]: rand_edges(ks[2], 40, n_paper, n_paper),
        EDGE_KEYS[1]: rand_edges(ks[3], 30, n_author, n_author),
        EDGE_KEYS[2]: rand_edges(ks[4], 24, n_paper, n_author),
        EDGE_KEYS[3]: rand_edges(ks[5], 24, n_author, n_paper),
    }

    batch = {
        "paper": jnp.concatenate([jnp.zeros(8, jnp.int32), jnp.ones(8, jnp.int32)]),
        "author": jnp.concatenate([jnp.zeros(6, jnp.int32), jnp.ones(6, jnp.int32)]),
    }
    index = 3

    params = init_params(ks[6], x_dim, y_dim)

    outs = multigraph_forward(params, x, edge_index, batch, index, k=k,
                              training=True, rng=ks[7], num_graphs=num_graphs)
    jax.block_until_ready(outs)

    y_hat = outs[0]
    assert y_hat.shape == (1, y_dim)
    assert outs[2].shape == (1, x_dim) and outs[3].shape == (1, x_dim)
    print("KERNEL_OK")
</pallas_src>

<mosaic_0001>
module attributes {stable_mosaic.version = 11 : i64} {
  func.func @_fused_gnn_layer_kernel(%arg0: i32, %arg1: i32, %arg2: memref<128x128xbf16, #tpu.memory_space<vmem>>, %arg3: memref<128x128xbf16, #tpu.memory_space<vmem>>, %arg4: memref<1x128xf32, #tpu.memory_space<vmem>>, %arg5: memref<128x128xbf16, #tpu.memory_space<vmem>>, %arg6: memref<128x128xbf16, #tpu.memory_space<vmem>>, %arg7: memref<128x128xbf16, #tpu.memory_space<vmem>>, %arg8: memref<128x128xbf16, #tpu.memory_space<vmem>>, %arg9: memref<128x128xbf16, #tpu.memory_space<vmem>>, %arg10: memref<128x128xbf16, #tpu.memory_space<vmem>>, %arg11: memref<128x128xbf16, #tpu.memory_space<vmem>>, %arg12: memref<128x128xf32, #tpu.memory_space<vmem>>) attributes {dimension_semantics = [#tpu.dimension_semantics<parallel>, #tpu.dimension_semantics<arbitrary>], iteration_bounds = array<i64: 1, 1>, scalar_prefetch = 0 : i64, scratch_operands = 1 : i64, tpu.core_type = #tpu.core_type<tc>, window_params = [{transform_indices = @transform_0, window_bounds = array<i64: 128, 128>}, {pipeline_mode = #tpu.pipeline_mode<synchronous>, transform_indices = @transform_1, window_bounds = array<i64: 128, 128>}, {pipeline_mode = #tpu.pipeline_mode<synchronous>, transform_indices = @transform_2, window_bounds = array<i64: 1, 128>}, {transform_indices = @transform_3, window_bounds = array<i64: 128, 128>}, {transform_indices = @transform_4, window_bounds = array<i64: 128, 128>}, {pipeline_mode = #tpu.pipeline_mode<synchronous>, transform_indices = @transform_5, window_bounds = array<i64: 128, 128>}, {transform_indices = @transform_6, window_bounds = array<i64: 128, 128>}, {transform_indices = @transform_7, window_bounds = array<i64: 128, 128>}, {pipeline_mode = #tpu.pipeline_mode<synchronous>, transform_indices = @transform_8, window_bounds = array<i64: 128, 128>}, {transform_indices = @transform_9, window_bounds = array<i64: 128, 128>}]} {
    %c0_i32 = arith.constant 0 : i32
    %0 = arith.cmpi eq, %arg1, %c0_i32 : i32
    %1 = arith.extui %0 : i1 to i32
    %c0_i32_0 = arith.constant 0 : i32
    %2 = arith.cmpi ne, %1, %c0_i32_0 : i32
    scf.if %2 {
      %c0_25 = arith.constant 0 : index
      %c0_26 = arith.constant 0 : index
      %24 = vector.load %arg2[%c0_25, %c0_26] : memref<128x128xbf16, #tpu.memory_space<vmem>>, vector<128x128xbf16>
      %c0_27 = arith.constant 0 : index
      %c0_28 = arith.constant 0 : index
      %25 = vector.load %arg3[%c0_27, %c0_28] : memref<128x128xbf16, #tpu.memory_space<vmem>>, vector<128x128xbf16>
      %cst_29 = arith.constant dense<0.000000e+00> : vector<128x128xf32>
      %26 = tpu.matmul %24, %25, %cst_29 {dimension_numbers = #tpu.dot_dimension_numbers<[1], [0], [0], [1], [0, 0, 1, 1], [], []>} : vector<128x128xbf16>, vector<128x128xbf16>, vector<128x128xf32> -> vector<128x128xf32>
      %c0_30 = arith.constant 0 : index
      %c0_31 = arith.constant 0 : index
      %27 = vector.load %arg4[%c0_30, %c0_31] : memref<1x128xf32, #tpu.memory_space<vmem>>, vector<1x128xf32>
      %28 = vector.broadcast %27 : vector<1x128xf32> to vector<128x128xf32>
      %29 = arith.addf %26, %28 : vector<128x128xf32>
      %c0_32 = arith.constant 0 : index
      %c0_33 = arith.constant 0 : index
      %30 = vector.load %arg12[%c0_32, %c0_33] : memref<128x128xf32, #tpu.memory_space<vmem>>, vector<128x128xf32>
      tpu.vector_store %arg12[%c0_32, %c0_33], %29 {strides = array<i32>} : memref<128x128xf32, #tpu.memory_space<vmem>>, vector<128x128xf32>,
    } else {
    }
    %c0 = arith.constant 0 : index
    %c0_1 = arith.constant 0 : index
    %3 = vector.load %arg5[%c0, %c0_1] : memref<128x128xbf16, #tpu.memory_space<vmem>>, vector<128x128xbf16>
    %c0_2 = arith.constant 0 : index
    %c0_3 = arith.constant 0 : index
    %4 = vector.load %arg6[%c0_2, %c0_3] : memref<128x128xbf16, #tpu.memory_space<vmem>>, vector<128x128xbf16>
    %cst = arith.constant dense<0.000000e+00> : vector<128x128xf32>
    %5 = tpu.matmul %3, %4, %cst {dimension_numbers = #tpu.dot_dimension_numbers<[1], [0], [0], [1], [0, 0, 1, 1], [], []>} : vector<128x128xbf16>, vector<128x128xbf16>, vector<128x128xf32> -> vector<128x128xf32>
    %c0_4 = arith.constant 0 : index
    %c0_5 = arith.constant 0 : index
    %6 = vector.load %arg12[%c0_4, %c0_5] : memref<128x128xf32, #tpu.memory_space<vmem>>, vector<128x128xf32>
    %7 = arith.truncf %5 : vector<128x128xf32> to vector<128x128xbf16>
    %c0_6 = arith.constant 0 : index
    %c0_7 = arith.constant 0 : index
    %8 = vector.load %arg7[%c0_6, %c0_7] : memref<128x128xbf16, #tpu.memory_space<vmem>>, vector<128x128xbf16>
    %cst_8 = arith.constant dense<0.000000e+00> : vector<128x128xf32>
    %9 = tpu.matmul %7, %8, %cst_8 {dimension_numbers = #tpu.dot_dimension_numbers<[1], [0], [0], [1], [0, 0, 1, 1], [], []>} : vector<128x128xbf16>, vector<128x128xbf16>, vector<128x128xf32> -> vector<128x128xf32>
    %10 = arith.addf %6, %9 : vector<128x128xf32>
    %c0_9 = arith.constant 0 : index
    %c0_10 = arith.constant 0 : index
    %11 = vector.load %arg12[%c0_9, %c0_10] : memref<128x128xf32, #tpu.memory_space<vmem>>, vector<128x128xf32>
    tpu.vector_store %arg12[%c0_9, %c0_10], %10 {strides = array<i32>} : memref<128x128xf32, #tpu.memory_space<vmem>>, vector<128x128xf32>,
    %c0_11 = arith.constant 0 : index
    %c0_12 = arith.constant 0 : index
    %12 = vector.load %arg8[%c0_11, %c0_12] : memref<128x128xbf16, #tpu.memory_space<vmem>>, vector<128x128xbf16>
    %c0_13 = arith.constant 0 : index
    %c0_14 = arith.constant 0 : index
    %13 = vector.load %arg9[%c0_13, %c0_14] : memref<128x128xbf16, #tpu.memory_space<vmem>>, vector<128x128xbf16>
    %cst_15 = arith.constant dense<0.000000e+00> : vector<128x128xf32>
    %14 = tpu.matmul %12, %13, %cst_15 {dimension_numbers = #tpu.dot_dimension_numbers<[1], [0], [0], [1], [0, 0, 1, 1], [], []>} : vector<128x128xbf16>, vector<128x128xbf16>, vector<128x128xf32> -> vector<128x128xf32>
    %c0_16 = arith.constant 0 : index
    %c0_17 = arith.constant 0 : index
    %15 = vector.load %arg12[%c0_16, %c0_17] : memref<128x128xf32, #tpu.memory_space<vmem>>, vector<128x128xf32>
    %16 = arith.truncf %14 : vector<128x128xf32> to vector<128x128xbf16>
    %c0_18 = arith.constant 0 : index
    %c0_19 = arith.constant 0 : index
    %17 = vector.load %arg10[%c0_18, %c0_19] : memref<128x128xbf16, #tpu.memory_space<vmem>>, vector<128x128xbf16>
    %cst_20 = arith.constant dense<0.000000e+00> : vector<128x128xf32>
    %18 = tpu.matmul %16, %17, %cst_20 {dimension_numbers = #tpu.dot_dimension_numbers<[1], [0], [0], [1], [0, 0, 1, 1], [], []>} : vector<128x128xbf16>, vector<128x128xbf16>, vector<128x128xf32> -> vector<128x128xf32>
    %19 = arith.addf %15, %18 : vector<128x128xf32>
    %c0_21 = arith.constant 0 : index
    %c0_22 = arith.constant 0 : index
    %20 = vector.load %arg12[%c0_21, %c0_22] : memref<128x128xf32, #tpu.memory_space<vmem>>, vector<128x128xf32>
    tpu.vector_store %arg12[%c0_21, %c0_22], %19 {strides = array<i32>} : memref<128x128xf32, #tpu.memory_space<vmem>>, vector<128x128xf32>,
    %c0_i32_23 = arith.constant 0 : i32
    %21 = arith.cmpi eq, %arg1, %c0_i32_23 : i32
    %22 = arith.extui %21 : i1 to i32
    %c0_i32_24 = arith.constant 0 : i32
    %23 = arith.cmpi ne, %22, %c0_i32_24 : i32
    scf.if %23 {
      %c0_25 = arith.constant 0 : index
      %c0_26 = arith.constant 0 : index
      %24 = vector.load %arg12[%c0_25, %c0_26] : memref<128x128xf32, #tpu.memory_space<vmem>>, vector<128x128xf32>
      %cst_27 = arith.constant 0.000000e+00 : f32
      %25 = vector.broadcast %cst_27 : f32 to vector<128x128xf32>
      %26 = arith.maximumf %24, %25 : vector<128x128xf32>
      %27 = arith.truncf %26 : vector<128x128xf32> to vector<128x128xbf16>
      %c0_28 = arith.constant 0 : index
      %c0_29 = arith.constant 0 : index
      %28 = vector.load %arg11[%c0_28, %c0_29] : memref<128x128xbf16, #tpu.memory_space<vmem>>, vector<128x128xbf16>
      tpu.vector_store %arg11[%c0_28, %c0_29], %27 {strides = array<i32>} : memref<128x128xbf16, #tpu.memory_space<vmem>>, vector<128x128xbf16>,
    } else {
    }
    return
  }
  func.func @transform_0(%arg0: i32, %arg1: i32) -> (i32, i32) {
    %c0_i32 = arith.constant 0 : i32
    %c0_i32_0 = arith.constant 0 : i32
    return %arg0, %c0_i32 : i32, i32
  }
  func.func @transform_1(%arg0: i32, %arg1: i32) -> (i32, i32) {
    %c0_i32 = arith.constant 0 : i32
    %c0_i32_0 = arith.constant 0 : i32
    %c0_i32_1 = arith.constant 0 : i32
    return %c0_i32, %c0_i32_0 : i32, i32
  }
  func.func @transform_2(%arg0: i32, %arg1: i32) -> (i32, i32) {
    %c0_i32 = arith.constant 0 : i32
    %c0_i32_0 = arith.constant 0 : i32
    %c0_i32_1 = arith.constant 0 : i32
    return %c0_i32, %c0_i32_0 : i32, i32
  }
  func.func @transform_3(%arg0: i32, %arg1: i32) -> (i32, i32) {
    %c0_i32 = arith.constant 0 : i32
    return %arg0, %arg1 : i32, i32
  }
  func.func @transform_4(%arg0: i32, %arg1: i32) -> (i32, i32) {
    %c0_i32 = arith.constant 0 : i32
    %c0_i32_0 = arith.constant 0 : i32
    return %arg1, %c0_i32 : i32, i32
  }
  func.func @transform_5(%arg0: i32, %arg1: i32) -> (i32, i32) {
    %c0_i32 = arith.constant 0 : i32
    %c0_i32_0 = arith.constant 0 : i32
    %c0_i32_1 = arith.constant 0 : i32
    return %c0_i32, %c0_i32_0 : i32, i32
  }
  func.func @transform_6(%arg0: i32, %arg1: i32) -> (i32, i32) {
    %c0_i32 = arith.constant 0 : i32
    return %arg0, %arg1 : i32, i32
  }
  func.func @transform_7(%arg0: i32, %arg1: i32) -> (i32, i32) {
    %c0_i32 = arith.constant 0 : i32
    %c0_i32_0 = arith.constant 0 : i32
    return %arg1, %c0_i32 : i32, i32
  }
  func.func @transform_8(%arg0: i32, %arg1: i32) -> (i32, i32) {
    %c0_i32 = arith.constant 0 : i32
    %c0_i32_0 = arith.constant 0 : i32
    %c0_i32_1 = arith.constant 0 : i32
    return %c0_i32, %c0_i32_0 : i32, i32
  }
  func.func @transform_9(%arg0: i32, %arg1: i32) -> (i32, i32) {
    %c0_i32 = arith.constant 0 : i32
    %c0_i32_0 = arith.constant 0 : i32
    return %arg0, %c0_i32 : i32, i32
  }
}

</mosaic_0001>

<llo_original>
// kernel: tpu_custom_call.1
$region0: #{tpu_custom_call.1}
  #allocation0 [shape = 'u32[]', space=smem, size = 0x4, offset = 0x4, fixed_abs, tag = 'smem constant byte address 0x4 - core index']
  #allocation1 [shape = 'u32[144,128]{1,0:T(1,128)}', space=vmem, size = 0x12000, scoped, tag = 'internal scratch']
  #allocation2 [shape = 'f32[128,128]{1,0:T(8,128)}', space=vmem, size = 0x10000, scoped, tag = 'scratch operand']
  %s0 = inlined_call_operand.hbm [shape: bf16[128,128], index: 0, kind: input, shape index: {}]
  %s1 = inlined_call_operand.hbm [shape: bf16[128,128], index: 1, kind: input, shape index: {}]
  %s2 = inlined_call_operand.vmem [shape: f32[1,128], index: 2, kind: input, shape index: {}]
  %s3 = inlined_call_operand.hbm [shape: bf16[128,128], index: 3, kind: input, shape index: {}]
  %s4 = inlined_call_operand.hbm [shape: bf16[128,128], index: 4, kind: input, shape index: {}]
  %s5 = inlined_call_operand.hbm [shape: bf16[128,128], index: 5, kind: input, shape index: {}]
  %s6 = inlined_call_operand.hbm [shape: bf16[128,128], index: 6, kind: input, shape index: {}]
  %s7 = inlined_call_operand.hbm [shape: bf16[128,128], index: 7, kind: input, shape index: {}]
  %s8 = inlined_call_operand.hbm [shape: bf16[128,128], index: 8, kind: input, shape index: {}]
  %s9 = inlined_call_operand.hbm [shape: bf16[128,128], index: 9, kind: output, shape index: {}]
  %s10 = sld [smem:[#allocation0]]
  $region86: #{tpu_custom_call.1} parent=0
    _
  %s12 = ssub.s32 1, %s10
  %s13 = scalar_select 0, %s12, %s10
  $region1: #{tpu_custom_call.1} parent=0
    #allocation3 [shape = 'u8[32768]{0}', space=vmem, size = 0x8000, scoped, tag = 'input window, operand 0, single buffered']
    #allocation4 [shape = 's32[1]{0}', space=sflag, size = 0x4, scoped, tag = 'scoped memory for tpu_custom_call.1']
    #allocation5 [shape = 's32[1]{0}', space=sflag, size = 0x4, scoped, tag = 'scoped memory for tpu_custom_call.1']
    #allocation6 [shape = 'u8[32768]{0}', space=vmem, size = 0x8000, scoped, tag = 'input window, operand 1, single buffered']
    #allocation7 [shape = 's32[1]{0}', space=sflag, size = 0x4, scoped, tag = 'scoped memory for tpu_custom_call.1']
    #allocation8 [shape = 'u8[32768]{0}', space=vmem, size = 0x8000, scoped, tag = 'input window, operand 3, single buffered']
    #allocation9 [shape = 'u8[32768]{0}', space=vmem, size = 0x8000, scoped, tag = 'input window, operand 4, single buffered']
    #allocation10 [shape = 's32[1]{0}', space=sflag, size = 0x4, scoped, tag = 'scoped memory for tpu_custom_call.1']
    #allocation11 [shape = 'u8[32768]{0}', space=vmem, size = 0x8000, scoped, tag = 'input window, operand 5, single buffered']
    #allocation12 [shape = 'u8[32768]{0}', space=vmem, size = 0x8000, scoped, tag = 'input window, operand 6, single buffered']
    #allocation13 [shape = 's32[1]{0}', space=sflag, size = 0x4, scoped, tag = 'scoped memory for tpu_custom_call.1']
    #allocation14 [shape = 'u8[32768]{0}', space=vmem, size = 0x8000, scoped, tag = 'input window, operand 7, single buffered']
    #allocation15 [shape = 'u8[32768]{0}', space=vmem, size = 0x8000, scoped, tag = 'input window, operand 8, single buffered']
    #allocation16 [shape = 's32[1]{0}', space=sflag, size = 0x4, scoped, tag = 'scoped memory for tpu_custom_call.1']
    #allocation17 [shape = 'u8[32768]{0}', space=vmem, size = 0x8000, scoped, tag = 'output window, operand 0, single buffered']
    %14 = vsyncpa [#allocation4], 0
    %15 = vsyncpa [#allocation7], 0
    %16 = vsyncpa [#allocation10], 0
    %17 = vsyncpa [#allocation13], 0
    %18 = vsyncpa [#allocation16], 0
    %19 = vsyncpa [#allocation5], 0
    // Predicated region
    $region2: #{tpu_custom_call.1} parent=1 // pred_check
      _
    $region3: #{tpu_custom_call.1} parent=1 // pred_check_branch
      %21 = sbr.rel (0) target = $region5
    $region4: #{tpu_custom_call.1} parent=1 // pred_region
      %s23 = ssub.s32 1024, 1024
      %24 = vsyncadd [#allocation4], %s23
      %s25 = sshll.u32 [#allocation3], 4
      %s26 = int_to_ptr.vmem [resolvable:$true] %s25
      %31 = dma.hbm_to_vmem [thread:$0]  %s0, 1024, %s26, [#allocation4], 64, 64, 4
    $region5: #{tpu_custom_call.1} parent=1 // pred_fallthru
      _
    // Predicated region
    $region6: #{tpu_custom_call.1} parent=1 // pred_check
      _
    $region7: #{tpu_custom_call.1} parent=1 // pred_check_branch
      %33 = sbr.rel (0) target = $region9
    $region8: #{tpu_custom_call.1} parent=1 // pred_region
      %s35 = ssub.s32 1024, 1024
      %36 = vsyncadd [#allocation7], %s35
      %s37 = sshll.u32 [#allocation6], 4
      %s38 = int_to_ptr.vmem [resolvable:$true] %s37
      %43 = dma.hbm_to_vmem [thread:$0]  %s1, 1024, %s38, [#allocation7], 64, 64, 4
    $region9: #{tpu_custom_call.1} parent=1 // pred_fallthru
      _
    // Predicated region
    $region10: #{tpu_custom_call.1} parent=1 // pred_check
      _
    $region11: #{tpu_custom_call.1} parent=1 // pred_check_branch
      %45 = sbr.rel (0) target = $region13
    $region12: #{tpu_custom_call.1} parent=1 // pred_region
      _
    $region13: #{tpu_custom_call.1} parent=1 // pred_fallthru
      _
    // Predicated region
    $region14: #{tpu_custom_call.1} parent=1 // pred_check
      _
    $region15: #{tpu_custom_call.1} parent=1 // pred_check_branch
      %47 = sbr.rel (0) target = $region17
    $region16: #{tpu_custom_call.1} parent=1 // pred_region
      %s49 = ssub.s32 1024, 1024
      %50 = vsyncadd [#allocation7], %s49
      %s51 = sshll.u32 [#allocation8], 4
      %s52 = int_to_ptr.vmem [resolvable:$true] %s51
      %57 = dma.hbm_to_vmem [thread:$0]  %s3, 1024, %s52, [#allocation7], 64, 64, 4
    $region17: #{tpu_custom_call.1} parent=1 // pred_fallthru
      _
    // Predicated region
    $region18: #{tpu_custom_call.1} parent=1 // pred_check
      _
    $region19: #{tpu_custom_call.1} parent=1 // pred_check_branch
      %59 = sbr.rel (0) target = $region21
    $region20: #{tpu_custom_call.1} parent=1 // pred_region
      %s61 = ssub.s32 1024, 1024
      %62 = vsyncadd [#allocation10], %s61
      %s63 = sshll.u32 [#allocation9], 4
      %s64 = int_to_ptr.vmem [resolvable:$true] %s63
      %69 = dma.hbm_to_vmem [thread:$0]  %s4, 1024, %s64, [#allocation10], 64, 64, 4
    $region21: #{tpu_custom_call.1} parent=1 // pred_fallthru
      _
    // Predicated region
    $region22: #{tpu_custom_call.1} parent=1 // pred_check
      _
    $region23: #{tpu_custom_call.1} parent=1 // pred_check_branch
      %71 = sbr.rel (0) target = $region25
    $region24: #{tpu_custom_call.1} parent=1 // pred_region
      %s73 = ssub.s32 1024, 1024
      %74 = vsyncadd [#allocation10], %s73
      %s75 = sshll.u32 [#allocation11], 4
      %s76 = int_to_ptr.vmem [resolvable:$true] %s75
      %81 = dma.hbm_to_vmem [thread:$0]  %s5, 1024, %s76, [#allocation10], 64, 64, 4
    $region25: #{tpu_custom_call.1} parent=1 // pred_fallthru
      _
    // Predicated region
    $region26: #{tpu_custom_call.1} parent=1 // pred_check
      _
    $region27: #{tpu_custom_call.1} parent=1 // pred_check_branch
      %83 = sbr.rel (0) target = $region29
    $region28: #{tpu_custom_call.1} parent=1 // pred_region
      %s85 = ssub.s32 1024, 1024
      %86 = vsyncadd [#allocation13], %s85
      %s87 = sshll.u32 [#allocation12], 4
      %s88 = int_to_ptr.vmem [resolvable:$true] %s87
      %93 = dma.hbm_to_vmem [thread:$0]  %s6, 1024, %s88, [#allocation13], 64, 64, 4
    $region29: #{tpu_custom_call.1} parent=1 // pred_fallthru
      _
    // Predicated region
    $region30: #{tpu_custom_call.1} parent=1 // pred_check
      _
    $region31: #{tpu_custom_call.1} parent=1 // pred_check_branch
      %95 = sbr.rel (0) target = $region33
    $region32: #{tpu_custom_call.1} parent=1 // pred_region
      %s97 = ssub.s32 1024, 1024
      %98 = vsyncadd [#allocation13], %s97
      %s99 = sshll.u32 [#allocation14], 4
      %s100 = int_to_ptr.vmem [resolvable:$true] %s99
      %105 = dma.hbm_to_vmem [thread:$0]  %s7, 1024, %s100, [#allocation13], 64, 64, 4
    $region33: #{tpu_custom_call.1} parent=1 // pred_fallthru
      _
    // Predicated region
    $region34: #{tpu_custom_call.1} parent=1 // pred_check
      _
    $region35: #{tpu_custom_call.1} parent=1 // pred_check_branch
      %107 = sbr.rel (0) target = $region37
    $region36: #{tpu_custom_call.1} parent=1 // pred_region
      %s109 = ssub.s32 1024, 1024
      %110 = vsyncadd [#allocation16], %s109
      %s111 = sshll.u32 [#allocation15], 4
      %s112 = int_to_ptr.vmem [resolvable:$true] %s111
      %117 = dma.hbm_to_vmem [thread:$0]  %s8, 1024, %s112, [#allocation16], 64, 64, 4
    $region37: #{tpu_custom_call.1} parent=1 // pred_fallthru
      _
    // Predicated region
    $region38: #{tpu_custom_call.1} parent=1 // pred_check
      _
    $region39: #{tpu_custom_call.1} parent=1 // pred_check_branch
      %119 = sbr.rel (0) target = $region41
    $region40: #{tpu_custom_call.1} parent=1 // pred_region
      %120 = dma.done [#allocation4], 1024
    $region41: #{tpu_custom_call.1} parent=1 // pred_fallthru
      _
    // Predicated region
    $region42: #{tpu_custom_call.1} parent=1 // pred_check
      _
    $region43: #{tpu_custom_call.1} parent=1 // pred_check_branch
      %122 = sbr.rel (0) target = $region45
    $region44: #{tpu_custom_call.1} parent=1 // pred_region
      %123 = dma.done [#allocation7], 1024
    $region45: #{tpu_custom_call.1} parent=1 // pred_fallthru
      _
    // Predicated region
    $region46: #{tpu_custom_call.1} parent=1 // pred_check
      _
    $region47: #{tpu_custom_call.1} parent=1 // pred_check_branch
      %125 = sbr.rel (0) target = $region49
    $region48: #{tpu_custom_call.1} parent=1 // pred_region
      %126 = dma.done [#allocation7], 1024
    $region49: #{tpu_custom_call.1} parent=1 // pred_fallthru
      _
    // Predicated region
    $region50: #{tpu_custom_call.1} parent=1 // pred_check
      _
    $region51: #{tpu_custom_call.1} parent=1 // pred_check_branch
      %128 = sbr.rel (0) target = $region53
    $region52: #{tpu_custom_call.1} parent=1 // pred_region
      %129 = dma.done [#allocation10], 1024
    $region53: #{tpu_custom_call.1} parent=1 // pred_fallthru
      _
    // Predicated region
    $region54: #{tpu_custom_call.1} parent=1 // pred_check
      _
    $region55: #{tpu_custom_call.1} parent=1 // pred_check_branch
      %131 = sbr.rel (0) target = $region57
    $region56: #{tpu_custom_call.1} parent=1 // pred_region
      %132 = dma.done [#allocation10], 1024
    $region57: #{tpu_custom_call.1} parent=1 // pred_fallthru
      _
    // Predicated region
    $region58: #{tpu_custom_call.1} parent=1 // pred_check
      _
    $region59: #{tpu_custom_call.1} parent=1 // pred_check_branch
      %134 = sbr.rel (0) target = $region61
    $region60: #{tpu_custom_call.1} parent=1 // pred_region
      %135 = dma.done [#allocation13], 1024
    $region61: #{tpu_custom_call.1} parent=1 // pred_fallthru
      _
    // Predicated region
    $region62: #{tpu_custom_call.1} parent=1 // pred_check
      _
    $region63: #{tpu_custom_call.1} parent=1 // pred_check_branch
      %137 = sbr.rel (0) target = $region65
    $region64: #{tpu_custom_call.1} parent=1 // pred_region
      %138 = dma.done [#allocation13], 1024
    $region65: #{tpu_custom_call.1} parent=1 // pred_fallthru
      _
    // Predicated region
    $region66: #{tpu_custom_call.1} parent=1 // pred_check
      _
    $region67: #{tpu_custom_call.1} parent=1 // pred_check_branch
      %140 = sbr.rel (0) target = $region69
    $region68: #{tpu_custom_call.1} parent=1 // pred_region
      %141 = dma.done [#allocation16], 1024
    $region69: #{tpu_custom_call.1} parent=1 // pred_fallthru
      _
    %p143 = scmp.eq.s32.totalorder 0, 0
    // Predicated region
    $region70: #{tpu_custom_call.1} parent=1 // pred_check
      %p144 = pneg %p143
    $region71: #{tpu_custom_call.1} parent=1 // pred_check_branch
      %146 = sbr.rel (%p144) target = $region73
    $region72: #{tpu_custom_call.1} parent=1 // pred_region
      %v147 = vld [vmem:[#allocation3] sm:$0xf]
      %v148 = vld [vmem:[#allocation3 + $0x4] sm:$0xf]
      %v149 = vld [vmem:[#allocation3 + $0x8] sm:$0xf]
      %v150 = vld [vmem:[#allocation3 + $0xc] sm:$0xf]
      %v151 = vld [vmem:[#allocation3 + $0x10] sm:$0xf]
      %v152 = vld [vmem:[#allocation3 + $0x14] sm:$0xf]
      %v153 = vld [vmem:[#allocation3 + $0x18] sm:$0xf]
      %v154 = vld [vmem:[#allocation3 + $0x1c] sm:$0xf]
      %v155 = vld [vmem:[#allocation3 + $0x20] sm:$0xf]
      %v156 = vld [vmem:[#allocation3 + $0x24] sm:$0xf]
      %v157 = vld [vmem:[#allocation3 + $0x28] sm:$0xf]
      %v158 = vld [vmem:[#allocation3 + $0x2c] sm:$0xf]
      %v159 = vld [vmem:[#allocation3 + $0x30] sm:$0xf]
      %v160 = vld [vmem:[#allocation3 + $0x34] sm:$0xf]
      %v161 = vld [vmem:[#allocation3 + $0x38] sm:$0xf]
      %v162 = vld [vmem:[#allocation3 + $0x3c] sm:$0xf]
      %v163 = vld [vmem:[#allocation6] sm:$0xf]
      %v164 = vld [vmem:[#allocation6 + $0x4] sm:$0xf]
      %v165 = vld [vmem:[#allocation6 + $0x8] sm:$0xf]
      %v166 = vld [vmem:[#allocation6 + $0xc] sm:$0xf]
      %v167 = vld [vmem:[#allocation6 + $0x10] sm:$0xf]
      %v168 = vld [vmem:[#allocation6 + $0x14] sm:$0xf]
      %v169 = vld [vmem:[#allocation6 + $0x18] sm:$0xf]
      %v170 = vld [vmem:[#allocation6 + $0x1c] sm:$0xf]
      %v171 = vld [vmem:[#allocation6 + $0x20] sm:$0xf]
      %v172 = vld [vmem:[#allocation6 + $0x24] sm:$0xf]
      %v173 = vld [vmem:[#allocation6 + $0x28] sm:$0xf]
      %v174 = vld [vmem:[#allocation6 + $0x2c] sm:$0xf]
      %v175 = vld [vmem:[#allocation6 + $0x30] sm:$0xf]
      %v176 = vld [vmem:[#allocation6 + $0x34] sm:$0xf]
      %v177 = vld [vmem:[#allocation6 + $0x38] sm:$0xf]
      %v178 = vld [vmem:[#allocation6 + $0x3c] sm:$0xf]
      %v179 = vld [vmem:[%s2] sm:$0x1]
      %v181 = vlaneseq
      %v182 = vshrl.u32 %v181, 7
      %v183 = vsub.s32 0, %v182
      %v184 = vrot.slane %v179, %v183
      %v202 = vunpack.c.l.b16 %v147
      %v203 = vunpack.c.l.b16 %v148
      %v204 = vunpack.c.l.b16 %v149
      %v205 = vunpack.c.l.b16 %v150
      %v206 = vunpack.c.l.b16 %v151
      %v207 = vunpack.c.l.b16 %v152
      %v208 = vunpack.c.l.b16 %v153
      %v209 = vunpack.c.l.b16 %v154
      %v210 = vunpack.c.l.b16 %v155
      %v211 = vunpack.c.l.b16 %v156
      %v212 = vunpack.c.l.b16 %v157
      %v213 = vunpack.c.l.b16 %v158
      %v214 = vunpack.c.l.b16 %v159
      %v215 = vunpack.c.l.b16 %v160
      %v216 = vunpack.c.l.b16 %v161
      %v217 = vunpack.c.l.b16 %v162
      %v218 = vpack.c.b16 %v203, %v202
      %v219 = vpack.c.b16 %v205, %v204
      %v220 = vpack.c.b16 %v207, %v206
      %v221 = vpack.c.b16 %v209, %v208
      %v222 = vpack.c.b16 %v211, %v210
      %v223 = vpack.c.b16 %v213, %v212
      %v224 = vpack.c.b16 %v215, %v214
      %v225 = vpack.c.b16 %v217, %v216
      %v250 = vunpack.c.l.b16 %v163
      %v251 = vunpack.c.l.b16 %v164
      %v252 = vunpack.c.l.b16 %v165
      %v253 = vunpack.c.l.b16 %v166
      %v254 = vunpack.c.l.b16 %v167
      %v255 = vunpack.c.l.b16 %v168
      %v256 = vunpack.c.l.b16 %v169
      %v257 = vunpack.c.l.b16 %v170
      %v258 = vunpack.c.l.b16 %v171
      %v259 = vunpack.c.l.b16 %v172
      %v260 = vunpack.c.l.b16 %v173
      %v261 = vunpack.c.l.b16 %v174
      %v262 = vunpack.c.l.b16 %v175
      %v263 = vunpack.c.l.b16 %v176
      %v264 = vunpack.c.l.b16 %v177
      %v265 = vunpack.c.l.b16 %v178
      %v266 = vpack.c.b16 %v251, %v250
      %v267 = vpack.c.b16 %v253, %v252
      %v268 = vpack.c.b16 %v255, %v254
      %v269 = vpack.c.b16 %v257, %v256
      %v270 = vpack.c.b16 %v259, %v258
      %v271 = vpack.c.b16 %v261, %v260
      %v272 = vpack.c.b16 %v263, %v262
      %v273 = vpack.c.b16 %v265, %v264
      %282 = vmatprep.subr.bf16.mxu0 0
      %283 = vmatpush1.bf16.msra.mxu0 %v273
      %284 = vmatprep.subr.bf16.mxu0 0
      %285 = vmatpush1.bf16.msra.mxu0 %v272
      %286 = vmatprep.subr.bf16.mxu0 0
      %287 = vmatpush1.bf16.msra.mxu0 %v271
      %288 = vmatprep.subr.bf16.mxu0 0
      %289 = vmatpush1.bf16.msra.mxu0 %v270
      %290 = vmatprep.subr.bf16.mxu0 0
      %291 = vmatpush1.bf16.msra.mxu0 %v269
      %292 = vmatprep.subr.bf16.mxu0 0
      %293 = vmatpush1.bf16.msra.mxu0 %v268
      %294 = vmatprep.subr.bf16.mxu0 0
      %295 = vmatpush1.bf16.msra.mxu0 %v267
      %296 = vmatprep.subr.bf16.mxu0 0
      %297 = vmatpush1.bf16.msra.mxu0 %v266
      %298 = vmatprep.subr.bf16.mxu0 0
      %299 = vmatpush2.bf16.msra.mxu0 0
      %300 = vmatprep.subr.bf16.mxu0 0
      %301 = vmatpush2.bf16.msra.mxu0 0
      %302 = vmatprep.subr.bf16.mxu0 0
      %303 = vmatpush2.bf16.msra.mxu0 0
      %304 = vmatprep.subr.bf16.mxu0 0
      %305 = vmatpush2.bf16.msra.mxu0 0
      %306 = vmatprep.subr.bf16.mxu0 0
      %307 = vmatpush2.bf16.msra.mxu0 0
      %308 = vmatprep.subr.bf16.mxu0 0
      %309 = vmatpush2.bf16.msra.mxu0 0
      %310 = vmatprep.subr.bf16.mxu0 0
      %311 = vmatpush2.bf16.msra.mxu0 0
      %312 = vmatprep.subr.bf16.mxu0 0
      %313 = vmatpush2.bf16.msra.mxu0 0
      %314 = vmatprep.mubr.bf16.mxu0 0
      %315 = vmatmul.mubr.bf16.gmra.mxu0 %v218
      %v316 = vpop.f32.mrf.mxu0
      %v317 = vadd.f32 %v184, %v316
      %v318 = vpop.f32.mrf.mxu0
      %v319 = vpop.f32.mrf.mxu0
      %v320 = vadd.f32 %v184, %v319
      %v321 = vpop.f32.mrf.mxu0
      %322 = vmatprep.mubr.bf16.mxu0 0
      %323 = vmatmul.mubr.bf16.gmra.mxu0 %v219
      %v324 = vpop.f32.mrf.mxu0
      %v325 = vadd.f32 %v184, %v324
      %v326 = vpop.f32.mrf.mxu0
      %v327 = vpop.f32.mrf.mxu0
      %v328 = vadd.f32 %v184, %v327
      %v329 = vpop.f32.mrf.mxu0
      %330 = vmatprep.mubr.bf16.mxu0 0
      %331 = vmatmul.mubr.bf16.gmra.mxu0 %v220
      %v332 = vpop.f32.mrf.mxu0
      %v333 = vadd.f32 %v184, %v332
      %v334 = vpop.f32.mrf.mxu0
      %v335 = vpop.f32.mrf.mxu0
      %v336 = vadd.f32 %v184, %v335
      %v337 = vpop.f32.mrf.mxu0
      %338 = vmatprep.mubr.bf16.mxu0 0
      %339 = vmatmul.mubr.bf16.gmra.mxu0 %v221
      %v340 = vpop.f32.mrf.mxu0
      %v341 = vadd.f32 %v184, %v340
      %v342 = vpop.f32.mrf.mxu0
      %v343 = vpop.f32.mrf.mxu0
      %v344 = vadd.f32 %v184, %v343
      %v345 = vpop.f32.mrf.mxu0
      %346 = vmatprep.mubr.bf16.mxu0 0
      %347 = vmatmul.mubr.bf16.gmra.mxu0 %v222
      %v348 = vpop.f32.mrf.mxu0
      %v349 = vadd.f32 %v184, %v348
      %v350 = vpop.f32.mrf.mxu0
      %v351 = vpop.f32.mrf.mxu0
      %v352 = vadd.f32 %v184, %v351
      %v353 = vpop.f32.mrf.mxu0
      %354 = vmatprep.mubr.bf16.mxu0 0
      %355 = vmatmul.mubr.bf16.gmra.mxu0 %v223
      %v356 = vpop.f32.mrf.mxu0
      %v357 = vadd.f32 %v184, %v356
      %v358 = vpop.f32.mrf.mxu0
      %v359 = vpop.f32.mrf.mxu0
      %v360 = vadd.f32 %v184, %v359
      %v361 = vpop.f32.mrf.mxu0
      %362 = vmatprep.mubr.bf16.mxu0 0
      %363 = vmatmul.mubr.bf16.gmra.mxu0 %v224
      %v364 = vpop.f32.mrf.mxu0
      %v365 = vadd.f32 %v184, %v364
      %v366 = vpop.f32.mrf.mxu0
      %v367 = vpop.f32.mrf.mxu0
      %v368 = vadd.f32 %v184, %v367
      %v369 = vpop.f32.mrf.mxu0
      %370 = vmatprep.mubr.bf16.mxu0 0
      %371 = vmatmul.mubr.bf16.gmra.mxu0 %v225
      %v372 = vpop.f32.mrf.mxu0
      %v373 = vadd.f32 %v184, %v372
      %v374 = vpop.f32.mrf.mxu0
      %v375 = vpop.f32.mrf.mxu0
      %v376 = vadd.f32 %v184, %v375
      %v377 = vpop.f32.mrf.mxu0
      %378 = vdwg.mxu0
      %379 = vst [vmem:[#allocation2] sm:$0xff] %v317
      %380 = vst [vmem:[#allocation2 + $0x8] sm:$0xff] %v320
      %381 = vst [vmem:[#allocation2 + $0x10] sm:$0xff] %v325
      %382 = vst [vmem:[#allocation2 + $0x18] sm:$0xff] %v328
      %383 = vst [vmem:[#allocation2 + $0x20] sm:$0xff] %v333
      %384 = vst [vmem:[#allocation2 + $0x28] sm:$0xff] %v336
      %385 = vst [vmem:[#allocation2 + $0x30] sm:$0xff] %v341
      %386 = vst [vmem:[#allocation2 + $0x38] sm:$0xff] %v344
      %387 = vst [vmem:[#allocation2 + $0x40] sm:$0xff] %v349
      %388 = vst [vmem:[#allocation2 + $0x48] sm:$0xff] %v352
      %389 = vst [vmem:[#allocation2 + $0x50] sm:$0xff] %v357
      %390 = vst [vmem:[#allocation2 + $0x58] sm:$0xff] %v360
      %391 = vst [vmem:[#allocation2 + $0x60] sm:$0xff] %v365
      %392 = vst [vmem:[#allocation2 + $0x68] sm:$0xff] %v368
      %393 = vst [vmem:[#allocation2 + $0x70] sm:$0xff] %v373
      %394 = vst [vmem:[#allocation2 + $0x78] sm:$0xff] %v376
    $region73: #{tpu_custom_call.1} parent=1 // pred_fallthru
      _
    %v395 = vld [vmem:[#allocation8] sm:$0xf]
    %v396 = vld [vmem:[#allocation8 + $0x4] sm:$0xf]
    %v397 = vld [vmem:[#allocation8 + $0x8] sm:$0xf]
    %v398 = vld [vmem:[#allocation8 + $0xc] sm:$0xf]
    %v399 = vld [vmem:[#allocation8 + $0x10] sm:$0xf]
    %v400 = vld [vmem:[#allocation8 + $0x14] sm:$0xf]
    %v401 = vld [vmem:[#allocation8 + $0x18] sm:$0xf]
    %v402 = vld [vmem:[#allocation8 + $0x1c] sm:$0xf]
    %v403 = vld [vmem:[#allocation8 + $0x20] sm:$0xf]
    %v404 = vld [vmem:[#allocation8 + $0x24] sm:$0xf]
    %v405 = vld [vmem:[#allocation8 + $0x28] sm:$0xf]
    %v406 = vld [vmem:[#allocation8 + $0x2c] sm:$0xf]
    %v407 = vld [vmem:[#allocation8 + $0x30] sm:$0xf]
    %v408 = vld [vmem:[#allocation8 + $0x34] sm:$0xf]
    %v409 = vld [vmem:[#allocation8 + $0x38] sm:$0xf]
    %v410 = vld [vmem:[#allocation8 + $0x3c] sm:$0xf]
    %v411 = vld [vmem:[#allocation9] sm:$0xf]
    %v412 = vld [vmem:[#allocation9 + $0x4] sm:$0xf]
    %v413 = vld [vmem:[#allocation9 + $0x8] sm:$0xf]
    %v414 = vld [vmem:[#allocation9 + $0xc] sm:$0xf]
    %v415 = vld [vmem:[#allocation9 + $0x10] sm:$0xf]
    %v416 = vld [vmem:[#allocation9 + $0x14] sm:$0xf]
    %v417 = vld [vmem:[#allocation9 + $0x18] sm:$0xf]
    %v418 = vld [vmem:[#allocation9 + $0x1c] sm:$0xf]
    %v419 = vld [vmem:[#allocation9 + $0x20] sm:$0xf]
    %v420 = vld [vmem:[#allocation9 + $0x24] sm:$0xf]
    %v421 = vld [vmem:[#allocation9 + $0x28] sm:$0xf]
    %v422 = vld [vmem:[#allocation9 + $0x2c] sm:$0xf]
    %v423 = vld [vmem:[#allocation9 + $0x30] sm:$0xf]
    %v424 = vld [vmem:[#allocation9 + $0x34] sm:$0xf]
    %v425 = vld [vmem:[#allocation9 + $0x38] sm:$0xf]
    %v426 = vld [vmem:[#allocation9 + $0x3c] sm:$0xf]
    %v443 = vunpack.c.l.b16 %v395
    %v444 = vunpack.c.l.b16 %v396
    %v445 = vunpack.c.l.b16 %v397
    %v446 = vunpack.c.l.b16 %v398
    %v447 = vunpack.c.l.b16 %v399
    %v448 = vunpack.c.l.b16 %v400
    %v449 = vunpack.c.l.b16 %v401
    %v450 = vunpack.c.l.b16 %v402
    %v451 = vunpack.c.l.b16 %v403
    %v452 = vunpack.c.l.b16 %v404
    %v453 = vunpack.c.l.b16 %v405
    %v454 = vunpack.c.l.b16 %v406
    %v455 = vunpack.c.l.b16 %v407
    %v456 = vunpack.c.l.b16 %v408
    %v457 = vunpack.c.l.b16 %v409
    %v458 = vunpack.c.l.b16 %v410
    %v459 = vpack.c.b16 %v444, %v443
    %v460 = vpack.c.b16 %v446, %v445
    %v461 = vpack.c.b16 %v448, %v447
    %v462 = vpack.c.b16 %v450, %v449
    %v463 = vpack.c.b16 %v452, %v451
    %v464 = vpack.c.b16 %v454, %v453
    %v465 = vpack.c.b16 %v456, %v455
    %v466 = vpack.c.b16 %v458, %v457
    %v491 = vunpack.c.l.b16 %v411
    %v492 = vunpack.c.l.b16 %v412
    %v493 = vunpack.c.l.b16 %v413
    %v494 = vunpack.c.l.b16 %v414
    %v495 = vunpack.c.l.b16 %v415
    %v496 = vunpack.c.l.b16 %v416
    %v497 = vunpack.c.l.b16 %v417
    %v498 = vunpack.c.l.b16 %v418
    %v499 = vunpack.c.l.b16 %v419
    %v500 = vunpack.c.l.b16 %v420
    %v501 = vunpack.c.l.b16 %v421
    %v502 = vunpack.c.l.b16 %v422
    %v503 = vunpack.c.l.b16 %v423
    %v504 = vunpack.c.l.b16 %v424
    %v505 = vunpack.c.l.b16 %v425
    %v506 = vunpack.c.l.b16 %v426
    %v507 = vpack.c.b16 %v492, %v491
    %v508 = vpack.c.b16 %v494, %v493
    %v509 = vpack.c.b16 %v496, %v495
    %v510 = vpack.c.b16 %v498, %v497
    %v511 = vpack.c.b16 %v500, %v499
    %v512 = vpack.c.b16 %v502, %v501
    %v513 = vpack.c.b16 %v504, %v503
    %v514 = vpack.c.b16 %v506, %v505
    %523 = vmatprep.subr.bf16.mxu0 0
    %524 = vmatpush1.bf16.msra.mxu0 %v514
    %525 = vmatprep.subr.bf16.mxu0 0
    %526 = vmatpush1.bf16.msra.mxu0 %v513
    %527 = vmatprep.subr.bf16.mxu0 0
    %528 = vmatpush1.bf16.msra.mxu0 %v512
    %529 = vmatprep.subr.bf16.mxu0 0
    %530 = vmatpush1.bf16.msra.mxu0 %v511
    %531 = vmatprep.subr.bf16.mxu0 0
    %532 = vmatpush1.bf16.msra.mxu0 %v510
    %533 = vmatprep.subr.bf16.mxu0 0
    %534 = vmatpush1.bf16.msra.mxu0 %v509
    %535 = vmatprep.subr.bf16.mxu0 0
    %536 = vmatpush1.bf16.msra.mxu0 %v508
    %537 = vmatprep.subr.bf16.mxu0 0
    %538 = vmatpush1.bf16.msra.mxu0 %v507
    %539 = vmatprep.subr.bf16.mxu0 0
    %540 = vmatpush2.bf16.msra.mxu0 0
    %541 = vmatprep.subr.bf16.mxu0 0
    %542 = vmatpush2.bf16.msra.mxu0 0
    %543 = vmatprep.subr.bf16.mxu0 0
    %544 = vmatpush2.bf16.msra.mxu0 0
    %545 = vmatprep.subr.bf16.mxu0 0
    %546 = vmatpush2.bf16.msra.mxu0 0
    %547 = vmatprep.subr.bf16.mxu0 0
    %548 = vmatpush2.bf16.msra.mxu0 0
    %549 = vmatprep.subr.bf16.mxu0 0
    %550 = vmatpush2.bf16.msra.mxu0 0
    %551 = vmatprep.subr.bf16.mxu0 0
    %552 = vmatpush2.bf16.msra.mxu0 0
    %553 = vmatprep.subr.bf16.mxu0 0
    %554 = vmatpush2.bf16.msra.mxu0 0
    %555 = vmatprep.mubr.bf16.mxu0 0
    %556 = vmatmul.mubr.bf16.gmra.mxu0 %v459
    %v557 = vpop.f32.mrf.mxu0
    %v558 = vadd.f32 0.0, %v557
    %v559 = vpop.f32.mrf.mxu0
    %v560 = vpop.f32.mrf.mxu0
    %v561 = vadd.f32 0.0, %v560
    %v562 = vpop.f32.mrf.mxu0
    %563 = vmatprep.mubr.bf16.mxu0 0
    %564 = vmatmul.mubr.bf16.gmra.mxu0 %v460
    %v565 = vpop.f32.mrf.mxu0
    %v566 = vadd.f32 0.0, %v565
    %v567 = vpop.f32.mrf.mxu0
    %v568 = vpop.f32.mrf.mxu0
    %v569 = vadd.f32 0.0, %v568
    %v570 = vpop.f32.mrf.mxu0
    %571 = vmatprep.mubr.bf16.mxu0 0
    %572 = vmatmul.mubr.bf16.gmra.mxu0 %v461
    %v573 = vpop.f32.mrf.mxu0
    %v574 = vadd.f32 0.0, %v573
    %v575 = vpop.f32.mrf.mxu0
    %v576 = vpop.f32.mrf.mxu0
    %v577 = vadd.f32 0.0, %v576
    %v578 = vpop.f32.mrf.mxu0
    %579 = vmatprep.mubr.bf16.mxu0 0
    %580 = vmatmul.mubr.bf16.gmra.mxu0 %v462
    %v581 = vpop.f32.mrf.mxu0
    %v582 = vadd.f32 0.0, %v581
    %v583 = vpop.f32.mrf.mxu0
    %v584 = vpop.f32.mrf.mxu0
    %v585 = vadd.f32 0.0, %v584
    %v586 = vpop.f32.mrf.mxu0
    %587 = vmatprep.mubr.bf16.mxu0 0
    %588 = vmatmul.mubr.bf16.gmra.mxu0 %v463
    %v589 = vpop.f32.mrf.mxu0
    %v590 = vadd.f32 0.0, %v589
    %v591 = vpop.f32.mrf.mxu0
    %v592 = vpop.f32.mrf.mxu0
    %v593 = vadd.f32 0.0, %v592
    %v594 = vpop.f32.mrf.mxu0
    %595 = vmatprep.mubr.bf16.mxu0 0
    %596 = vmatmul.mubr.bf16.gmra.mxu0 %v464
    %v597 = vpop.f32.mrf.mxu0
    %v598 = vadd.f32 0.0, %v597
    %v599 = vpop.f32.mrf.mxu0
    %v600 = vpop.f32.mrf.mxu0
    %v601 = vadd.f32 0.0, %v600
    %v602 = vpop.f32.mrf.mxu0
    %603 = vmatprep.mubr.bf16.mxu0 0
    %604 = vmatmul.mubr.bf16.gmra.mxu0 %v465
    %v605 = vpop.f32.mrf.mxu0
    %v606 = vadd.f32 0.0, %v605
    %v607 = vpop.f32.mrf.mxu0
    %v608 = vpop.f32.mrf.mxu0
    %v609 = vadd.f32 0.0, %v608
    %v610 = vpop.f32.mrf.mxu0
    %611 = vmatprep.mubr.bf16.mxu0 0
    %612 = vmatmul.mubr.bf16.gmra.mxu0 %v466
    %v613 = vpop.f32.mrf.mxu0
    %v614 = vadd.f32 0.0, %v613
    %v615 = vpop.f32.mrf.mxu0
    %v616 = vpop.f32.mrf.mxu0
    %v617 = vadd.f32 0.0, %v616
    %v618 = vpop.f32.mrf.mxu0
    %619 = vdwg.mxu0
    %v620 = vld [vmem:[#allocation2] sm:$0xff]
    %v621 = vld [vmem:[#allocation2 + $0x8] sm:$0xff]
    %v622 = vld [vmem:[#allocation2 + $0x10] sm:$0xff]
    %v623 = vld [vmem:[#allocation2 + $0x18] sm:$0xff]
    %v624 = vld [vmem:[#allocation2 + $0x20] sm:$0xff]
    %v625 = vld [vmem:[#allocation2 + $0x28] sm:$0xff]
    %v626 = vld [vmem:[#allocation2 + $0x30] sm:$0xff]
    %v627 = vld [vmem:[#allocation2 + $0x38] sm:$0xff]
    %v628 = vld [vmem:[#allocation2 + $0x40] sm:$0xff]
    %v629 = vld [vmem:[#allocation2 + $0x48] sm:$0xff]
    %v630 = vld [vmem:[#allocation2 + $0x50] sm:$0xff]
    %v631 = vld [vmem:[#allocation2 + $0x58] sm:$0xff]
    %v632 = vld [vmem:[#allocation2 + $0x60] sm:$0xff]
    %v633 = vld [vmem:[#allocation2 + $0x68] sm:$0xff]
    %v634 = vld [vmem:[#allocation2 + $0x70] sm:$0xff]
    %v635 = vld [vmem:[#allocation2 + $0x78] sm:$0xff]
    %v636 = vpack.c.bf16 %v561, %v558
    %v637 = vpack.c.bf16 %v569, %v566
    %v638 = vpack.c.bf16 %v577, %v574
    %v639 = vpack.c.bf16 %v585, %v582
    %v640 = vpack.c.bf16 %v593, %v590
    %v641 = vpack.c.bf16 %v601, %v598
    %v642 = vpack.c.bf16 %v609, %v606
    %v643 = vpack.c.bf16 %v617, %v614
    %v644 = vld [vmem:[#allocation11] sm:$0xf]
    %v645 = vld [vmem:[#allocation11 + $0x4] sm:$0xf]
    %v646 = vld [vmem:[#allocation11 + $0x8] sm:$0xf]
    %v647 = vld [vmem:[#allocation11 + $0xc] sm:$0xf]
    %v648 = vld [vmem:[#allocation11 + $0x10] sm:$0xf]
    %v649 = vld [vmem:[#allocation11 + $0x14] sm:$0xf]
    %v650 = vld [vmem:[#allocation11 + $0x18] sm:$0xf]
    %v651 = vld [vmem:[#allocation11 + $0x1c] sm:$0xf]
    %v652 = vld [vmem:[#allocation11 + $0x20] sm:$0xf]
    %v653 = vld [vmem:[#allocation11 + $0x24] sm:$0xf]
    %v654 = vld [vmem:[#allocation11 + $0x28] sm:$0xf]
    %v655 = vld [vmem:[#allocation11 + $0x2c] sm:$0xf]
    %v656 = vld [vmem:[#allocation11 + $0x30] sm:$0xf]
    %v657 = vld [vmem:[#allocation11 + $0x34] sm:$0xf]
    %v658 = vld [vmem:[#allocation11 + $0x38] sm:$0xf]
    %v659 = vld [vmem:[#allocation11 + $0x3c] sm:$0xf]
    %v676 = vunpack.c.l.b16 %v644
    %v677 = vunpack.c.l.b16 %v645
    %v678 = vunpack.c.l.b16 %v646
    %v679 = vunpack.c.l.b16 %v647
    %v680 = vunpack.c.l.b16 %v648
    %v681 = vunpack.c.l.b16 %v649
    %v682 = vunpack.c.l.b16 %v650
    %v683 = vunpack.c.l.b16 %v651
    %v684 = vunpack.c.l.b16 %v652
    %v685 = vunpack.c.l.b16 %v653
    %v686 = vunpack.c.l.b16 %v654
    %v687 = vunpack.c.l.b16 %v655
    %v688 = vunpack.c.l.b16 %v656
    %v689 = vunpack.c.l.b16 %v657
    %v690 = vunpack.c.l.b16 %v658
    %v691 = vunpack.c.l.b16 %v659
    %v692 = vpack.c.b16 %v677, %v676
    %v693 = vpack.c.b16 %v679, %v678
    %v694 = vpack.c.b16 %v681, %v680
    %v695 = vpack.c.b16 %v683, %v682
    %v696 = vpack.c.b16 %v685, %v684
    %v697 = vpack.c.b16 %v687, %v686
    %v698 = vpack.c.b16 %v689, %v688
    %v699 = vpack.c.b16 %v691, %v690
    %708 = vmatprep.subr.bf16.mxu0 0
    %709 = vmatpush1.bf16.msra.mxu0 %v699
    %710 = vmatprep.subr.bf16.mxu0 0
    %711 = vmatpush1.bf16.msra.mxu0 %v698
    %712 = vmatprep.subr.bf16.mxu0 0
    %713 = vmatpush1.bf16.msra.mxu0 %v697
    %714 = vmatprep.subr.bf16.mxu0 0
    %715 = vmatpush1.bf16.msra.mxu0 %v696
    %716 = vmatprep.subr.bf16.mxu0 0
    %717 = vmatpush1.bf16.msra.mxu0 %v695
    %718 = vmatprep.subr.bf16.mxu0 0
    %719 = vmatpush1.bf16.msra.mxu0 %v694
    %720 = vmatprep.subr.bf16.mxu0 0
    %721 = vmatpush1.bf16.msra.mxu0 %v693
    %722 = vmatprep.subr.bf16.mxu0 0
    %723 = vmatpush1.bf16.msra.mxu0 %v692
    %724 = vmatprep.subr.bf16.mxu0 0
    %725 = vmatpush2.bf16.msra.mxu0 0
    %726 = vmatprep.subr.bf16.mxu0 0
    %727 = vmatpush2.bf16.msra.mxu0 0
    %728 = vmatprep.subr.bf16.mxu0 0
    %729 = vmatpush2.bf16.msra.mxu0 0
    %730 = vmatprep.subr.bf16.mxu0 0
    %731 = vmatpush2.bf16.msra.mxu0 0
    %732 = vmatprep.subr.bf16.mxu0 0
    %733 = vmatpush2.bf16.msra.mxu0 0
    %734 = vmatprep.subr.bf16.mxu0 0
    %735 = vmatpush2.bf16.msra.mxu0 0
    %736 = vmatprep.subr.bf16.mxu0 0
    %737 = vmatpush2.bf16.msra.mxu0 0
    %738 = vmatprep.subr.bf16.mxu0 0
    %739 = vmatpush2.bf16.msra.mxu0 0
    %740 = vmatprep.mubr.bf16.mxu0 0
    %741 = vmatmul.mubr.bf16.gmra.mxu0 %v636
    %v742 = vpop.f32.mrf.mxu0
    %v743 = vadd.f32 0.0, %v742
    %v744 = vpop.f32.mrf.mxu0
    %v745 = vpop.f32.mrf.mxu0
    %v746 = vadd.f32 0.0, %v745
    %v747 = vpop.f32.mrf.mxu0
    %748 = vmatprep.mubr.bf16.mxu0 0
    %749 = vmatmul.mubr.bf16.gmra.mxu0 %v637
    %v750 = vpop.f32.mrf.mxu0
    %v751 = vadd.f32 0.0, %v750
    %v752 = vpop.f32.mrf.mxu0
    %v753 = vpop.f32.mrf.mxu0
    %v754 = vadd.f32 0.0, %v753
    %v755 = vpop.f32.mrf.mxu0
    %756 = vmatprep.mubr.bf16.mxu0 0
    %757 = vmatmul.mubr.bf16.gmra.mxu0 %v638
    %v758 = vpop.f32.mrf.mxu0
    %v759 = vadd.f32 0.0, %v758
    %v760 = vpop.f32.mrf.mxu0
    %v761 = vpop.f32.mrf.mxu0
    %v762 = vadd.f32 0.0, %v761
    %v763 = vpop.f32.mrf.mxu0
    %764 = vmatprep.mubr.bf16.mxu0 0
    %765 = vmatmul.mubr.bf16.gmra.mxu0 %v639
    %v766 = vpop.f32.mrf.mxu0
    %v767 = vadd.f32 0.0, %v766
    %v768 = vpop.f32.mrf.mxu0
    %v769 = vpop.f32.mrf.mxu0
    %v770 = vadd.f32 0.0, %v769
    %v771 = vpop.f32.mrf.mxu0
    %772 = vmatprep.mubr.bf16.mxu0 0
    %773 = vmatmul.mubr.bf16.gmra.mxu0 %v640
    %v774 = vpop.f32.mrf.mxu0
    %v775 = vadd.f32 0.0, %v774
    %v776 = vpop.f32.mrf.mxu0
    %v777 = vpop.f32.mrf.mxu0
    %v778 = vadd.f32 0.0, %v777
    %v779 = vpop.f32.mrf.mxu0
    %780 = vmatprep.mubr.bf16.mxu0 0
    %781 = vmatmul.mubr.bf16.gmra.mxu0 %v641
    %v782 = vpop.f32.mrf.mxu0
    %v783 = vadd.f32 0.0, %v782
    %v784 = vpop.f32.mrf.mxu0
    %v785 = vpop.f32.mrf.mxu0
    %v786 = vadd.f32 0.0, %v785
    %v787 = vpop.f32.mrf.mxu0
    %788 = vmatprep.mubr.bf16.mxu0 0
    %789 = vmatmul.mubr.bf16.gmra.mxu0 %v642
    %v790 = vpop.f32.mrf.mxu0
    %v791 = vadd.f32 0.0, %v790
    %v792 = vpop.f32.mrf.mxu0
    %v793 = vpop.f32.mrf.mxu0
    %v794 = vadd.f32 0.0, %v793
    %v795 = vpop.f32.mrf.mxu0
    %796 = vmatprep.mubr.bf16.mxu0 0
    %797 = vmatmul.mubr.bf16.gmra.mxu0 %v643
    %v798 = vpop.f32.mrf.mxu0
    %v799 = vadd.f32 0.0, %v798
    %v800 = vpop.f32.mrf.mxu0
    %v801 = vpop.f32.mrf.mxu0
    %v802 = vadd.f32 0.0, %v801
    %v803 = vpop.f32.mrf.mxu0
    %804 = vdwg.mxu0
    %v805 = vadd.f32 %v620, %v743
    %v806 = vadd.f32 %v621, %v746
    %v807 = vadd.f32 %v622, %v751
    %v808 = vadd.f32 %v623, %v754
    %v809 = vadd.f32 %v624, %v759
    %v810 = vadd.f32 %v625, %v762
    %v811 = vadd.f32 %v626, %v767
    %v812 = vadd.f32 %v627, %v770
    %v813 = vadd.f32 %v628, %v775
    %v814 = vadd.f32 %v629, %v778
    %v815 = vadd.f32 %v630, %v783
    %v816 = vadd.f32 %v631, %v786
    %v817 = vadd.f32 %v632, %v791
    %v818 = vadd.f32 %v633, %v794
    %v819 = vadd.f32 %v634, %v799
    %v820 = vadd.f32 %v635, %v802
    %821 = vst [vmem:[#allocation2] sm:$0xff] %v805
    %822 = vst [vmem:[#allocation2 + $0x8] sm:$0xff] %v806
    %823 = vst [vmem:[#allocation2 + $0x10] sm:$0xff] %v807
    %824 = vst [vmem:[#allocation2 + $0x18] sm:$0xff] %v808
    %825 = vst [vmem:[#allocation2 + $0x20] sm:$0xff] %v809
    %826 = vst [vmem:[#allocation2 + $0x28] sm:$0xff] %v810
    %827 = vst [vmem:[#allocation2 + $0x30] sm:$0xff] %v811
    %828 = vst [vmem:[#allocation2 + $0x38] sm:$0xff] %v812
    %829 = vst [vmem:[#allocation2 + $0x40] sm:$0xff] %v813
    %830 = vst [vmem:[#allocation2 + $0x48] sm:$0xff] %v814
    %831 = vst [vmem:[#allocation2 + $0x50] sm:$0xff] %v815
    %832 = vst [vmem:[#allocation2 + $0x58] sm:$0xff] %v816
    %833 = vst [vmem:[#allocation2 + $0x60] sm:$0xff] %v817
    %834 = vst [vmem:[#allocation2 + $0x68] sm:$0xff] %v818
    %835 = vst [vmem:[#allocation2 + $0x70] sm:$0xff] %v819
    %836 = vst [vmem:[#allocation2 + $0x78] sm:$0xff] %v820
    %v837 = vld [vmem:[#allocation12] sm:$0xf]
    %v838 = vld [vmem:[#allocation12 + $0x4] sm:$0xf]
    %v839 = vld [vmem:[#allocation12 + $0x8] sm:$0xf]
    %v840 = vld [vmem:[#allocation12 + $0xc] sm:$0xf]
    %v841 = vld [vmem:[#allocation12 + $0x10] sm:$0xf]
    %v842 = vld [vmem:[#allocation12 + $0x14] sm:$0xf]
    %v843 = vld [vmem:[#allocation12 + $0x18] sm:$0xf]
    %v844 = vld [vmem:[#allocation12 + $0x1c] sm:$0xf]
    %v845 = vld [vmem:[#allocation12 + $0x20] sm:$0xf]
    %v846 = vld [vmem:[#allocation12 + $0x24] sm:$0xf]
    %v847 = vld [vmem:[#allocation12 + $0x28] sm:$0xf]
    %v848 = vld [vmem:[#allocation12 + $0x2c] sm:$0xf]
    %v849 = vld [vmem:[#allocation12 + $0x30] sm:$0xf]
    %v850 = vld [vmem:[#allocation12 + $0x34] sm:$0xf]
    %v851 = vld [vmem:[#allocation12 + $0x38] sm:$0xf]
    %v852 = vld [vmem:[#allocation12 + $0x3c] sm:$0xf]
    %v853 = vld [vmem:[#allocation14] sm:$0xf]
    %v854 = vld [vmem:[#allocation14 + $0x4] sm:$0xf]
    %v855 = vld [vmem:[#allocation14 + $0x8] sm:$0xf]
    %v856 = vld [vmem:[#allocation14 + $0xc] sm:$0xf]
    %v857 = vld [vmem:[#allocation14 + $0x10] sm:$0xf]
    %v858 = vld [vmem:[#allocation14 + $0x14] sm:$0xf]
    %v859 = vld [vmem:[#allocation14 + $0x18] sm:$0xf]
    %v860 = vld [vmem:[#allocation14 + $0x1c] sm:$0xf]
    %v861 = vld [vmem:[#allocation14 + $0x20] sm:$0xf]
    %v862 = vld [vmem:[#allocation14 + $0x24] sm:$0xf]
    %v863 = vld [vmem:[#allocation14 + $0x28] sm:$0xf]
    %v864 = vld [vmem:[#allocation14 + $0x2c] sm:$0xf]
    %v865 = vld [vmem:[#allocation14 + $0x30] sm:$0xf]
    %v866 = vld [vmem:[#allocation14 + $0x34] sm:$0xf]
    %v867 = vld [vmem:[#allocation14 + $0x38] sm:$0xf]
    %v868 = vld [vmem:[#allocation14 + $0x3c] sm:$0xf]
    %v885 = vunpack.c.l.b16 %v837
    %v886 = vunpack.c.l.b16 %v838
    %v887 = vunpack.c.l.b16 %v839
    %v888 = vunpack.c.l.b16 %v840
    %v889 = vunpack.c.l.b16 %v841
    %v890 = vunpack.c.l.b16 %v842
    %v891 = vunpack.c.l.b16 %v843
    %v892 = vunpack.c.l.b16 %v844
    %v893 = vunpack.c.l.b16 %v845
    %v894 = vunpack.c.l.b16 %v846
    %v895 = vunpack.c.l.b16 %v847
    %v896 = vunpack.c.l.b16 %v848
    %v897 = vunpack.c.l.b16 %v849
    %v898 = vunpack.c.l.b16 %v850
    %v899 = vunpack.c.l.b16 %v851
    %v900 = vunpack.c.l.b16 %v852
    %v901 = vpack.c.b16 %v886, %v885
    %v902 = vpack.c.b16 %v888, %v887
    %v903 = vpack.c.b16 %v890, %v889
    %v904 = vpack.c.b16 %v892, %v891
    %v905 = vpack.c.b16 %v894, %v893
    %v906 = vpack.c.b16 %v896, %v895
    %v907 = vpack.c.b16 %v898, %v897
    %v908 = vpack.c.b16 %v900, %v899
    %v933 = vunpack.c.l.b16 %v853
    %v934 = vunpack.c.l.b16 %v854
    %v935 = vunpack.c.l.b16 %v855
    %v936 = vunpack.c.l.b16 %v856
    %v937 = vunpack.c.l.b16 %v857
    %v938 = vunpack.c.l.b16 %v858
    %v939 = vunpack.c.l.b16 %v859
    %v940 = vunpack.c.l.b16 %v860
    %v941 = vunpack.c.l.b16 %v861
    %v942 = vunpack.c.l.b16 %v862
    %v943 = vunpack.c.l.b16 %v863
    %v944 = vunpack.c.l.b16 %v864
    %v945 = vunpack.c.l.b16 %v865
    %v946 = vunpack.c.l.b16 %v866
    %v947 = vunpack.c.l.b16 %v867
    %v948 = vunpack.c.l.b16 %v868
    %v949 = vpack.c.b16 %v934, %v933
    %v950 = vpack.c.b16 %v936, %v935
    %v951 = vpack.c.b16 %v938, %v937
    %v952 = vpack.c.b16 %v940, %v939
    %v953 = vpack.c.b16 %v942, %v941
    %v954 = vpack.c.b16 %v944, %v943
    %v955 = vpack.c.b16 %v946, %v945
    %v956 = vpack.c.b16 %v948, %v947
    %965 = vmatprep.subr.bf16.mxu0 0
    %966 = vmatpush1.bf16.msra.mxu0 %v956
    %967 = vmatprep.subr.bf16.mxu0 0
    %968 = vmatpush1.bf16.msra.mxu0 %v955
    %969 = vmatprep.subr.bf16.mxu0 0
    %970 = vmatpush1.bf16.msra.mxu0 %v954
    %971 = vmatprep.subr.bf16.mxu0 0
    %972 = vmatpush1.bf16.msra.mxu0 %v953
    %973 = vmatprep.subr.bf16.mxu0 0
    %974 = vmatpush1.bf16.msra.mxu0 %v952
    %975 = vmatprep.subr.bf16.mxu0 0
    %976 = vmatpush1.bf16.msra.mxu0 %v951
    %977 = vmatprep.subr.bf16.mxu0 0
    %978 = vmatpush1.bf16.msra.mxu0 %v950
    %979 = vmatprep.subr.bf16.mxu0 0
    %980 = vmatpush1.bf16.msra.mxu0 %v949
    %981 = vmatprep.subr.bf16.mxu0 0
    %982 = vmatpush2.bf16.msra.mxu0 0
    %983 = vmatprep.subr.bf16.mxu0 0
    %984 = vmatpush2.bf16.msra.mxu0 0
    %985 = vmatprep.subr.bf16.mxu0 0
    %986 = vmatpush2.bf16.msra.mxu0 0
    %987 = vmatprep.subr.bf16.mxu0 0
    %988 = vmatpush2.bf16.msra.mxu0 0
    %989 = vmatprep.subr.bf16.mxu0 0
    %990 = vmatpush2.bf16.msra.mxu0 0
    %991 = vmatprep.subr.bf16.mxu0 0
    %992 = vmatpush2.bf16.msra.mxu0 0
    %993 = vmatprep.subr.bf16.mxu0 0
    %994 = vmatpush2.bf16.msra.mxu0 0
    %995 = vmatprep.subr.bf16.mxu0 0
    %996 = vmatpush2.bf16.msra.mxu0 0
    %997 = vmatprep.mubr.bf16.mxu0 0
    %998 = vmatmul.mubr.bf16.gmra.mxu0 %v901
    %v999 = vpop.f32.mrf.mxu0
    %v1000 = vadd.f32 0.0, %v999
    %v1001 = vpop.f32.mrf.mxu0
    %v1002 = vpop.f32.mrf.mxu0
    %v1003 = vadd.f32 0.0, %v1002
    %v1004 = vpop.f32.mrf.mxu0
    %1005 = vmatprep.mubr.bf16.mxu0 0
    %1006 = vmatmul.mubr.bf16.gmra.mxu0 %v902
    %v1007 = vpop.f32.mrf.mxu0
    %v1008 = vadd.f32 0.0, %v1007
    %v1009 = vpop.f32.mrf.mxu0
    %v1010 = vpop.f32.mrf.mxu0
    %v1011 = vadd.f32 0.0, %v1010
    %v1012 = vpop.f32.mrf.mxu0
    %1013 = vmatprep.mubr.bf16.mxu0 0
    %1014 = vmatmul.mubr.bf16.gmra.mxu0 %v903
    %v1015 = vpop.f32.mrf.mxu0
    %v1016 = vadd.f32 0.0, %v1015
    %v1017 = vpop.f32.mrf.mxu0
    %v1018 = vpop.f32.mrf.mxu0
    %v1019 = vadd.f32 0.0, %v1018
    %v1020 = vpop.f32.mrf.mxu0
    %1021 = vmatprep.mubr.bf16.mxu0 0
    %1022 = vmatmul.mubr.bf16.gmra.mxu0 %v904
    %v1023 = vpop.f32.mrf.mxu0
    %v1024 = vadd.f32 0.0, %v1023
    %v1025 = vpop.f32.mrf.mxu0
    %v1026 = vpop.f32.mrf.mxu0
    %v1027 = vadd.f32 0.0, %v1026
    %v1028 = vpop.f32.mrf.mxu0
    %1029 = vmatprep.mubr.bf16.mxu0 0
    %1030 = vmatmul.mubr.bf16.gmra.mxu0 %v905
    %v1031 = vpop.f32.mrf.mxu0
    %v1032 = vadd.f32 0.0, %v1031
    %v1033 = vpop.f32.mrf.mxu0
    %v1034 = vpop.f32.mrf.mxu0
    %v1035 = vadd.f32 0.0, %v1034
    %v1036 = vpop.f32.mrf.mxu0
    %1037 = vmatprep.mubr.bf16.mxu0 0
    %1038 = vmatmul.mubr.bf16.gmra.mxu0 %v906
    %v1039 = vpop.f32.mrf.mxu0
    %v1040 = vadd.f32 0.0, %v1039
    %v1041 = vpop.f32.mrf.mxu0
    %v1042 = vpop.f32.mrf.mxu0
    %v1043 = vadd.f32 0.0, %v1042
    %v1044 = vpop.f32.mrf.mxu0
    %1045 = vmatprep.mubr.bf16.mxu0 0
    %1046 = vmatmul.mubr.bf16.gmra.mxu0 %v907
    %v1047 = vpop.f32.mrf.mxu0
    %v1048 = vadd.f32 0.0, %v1047
    %v1049 = vpop.f32.mrf.mxu0
    %v1050 = vpop.f32.mrf.mxu0
    %v1051 = vadd.f32 0.0, %v1050
    %v1052 = vpop.f32.mrf.mxu0
    %1053 = vmatprep.mubr.bf16.mxu0 0
    %1054 = vmatmul.mubr.bf16.gmra.mxu0 %v908
    %v1055 = vpop.f32.mrf.mxu0
    %v1056 = vadd.f32 0.0, %v1055
    %v1057 = vpop.f32.mrf.mxu0
    %v1058 = vpop.f32.mrf.mxu0
    %v1059 = vadd.f32 0.0, %v1058
    %v1060 = vpop.f32.mrf.mxu0
    %1061 = vdwg.mxu0
    %v1062 = vld [vmem:[#allocation2] sm:$0xff]
    %v1063 = vld [vmem:[#allocation2 + $0x8] sm:$0xff]
    %v1064 = vld [vmem:[#allocation2 + $0x10] sm:$0xff]
    %v1065 = vld [vmem:[#allocation2 + $0x18] sm:$0xff]
    %v1066 = vld [vmem:[#allocation2 + $0x20] sm:$0xff]
    %v1067 = vld [vmem:[#allocation2 + $0x28] sm:$0xff]
    %v1068 = vld [vmem:[#allocation2 + $0x30] sm:$0xff]
    %v1069 = vld [vmem:[#allocation2 + $0x38] sm:$0xff]
    %v1070 = vld [vmem:[#allocation2 + $0x40] sm:$0xff]
    %v1071 = vld [vmem:[#allocation2 + $0x48] sm:$0xff]
    %v1072 = vld [vmem:[#allocation2 + $0x50] sm:$0xff]
    %v1073 = vld [vmem:[#allocation2 + $0x58] sm:$0xff]
    %v1074 = vld [vmem:[#allocation2 + $0x60] sm:$0xff]
    %v1075 = vld [vmem:[#allocation2 + $0x68] sm:$0xff]
    %v1076 = vld [vmem:[#allocation2 + $0x70] sm:$0xff]
    %v1077 = vld [vmem:[#allocation2 + $0x78] sm:$0xff]
    %v1078 = vpack.c.bf16 %v1003, %v1000
    %v1079 = vpack.c.bf16 %v1011, %v1008
    %v1080 = vpack.c.bf16 %v1019, %v1016
    %v1081 = vpack.c.bf16 %v1027, %v1024
    %v1082 = vpack.c.bf16 %v1035, %v1032
    %v1083 = vpack.c.bf16 %v1043, %v1040
    %v1084 = vpack.c.bf16 %v1051, %v1048
    %v1085 = vpack.c.bf16 %v1059, %v1056
    %v1086 = vld [vmem:[#allocation15] sm:$0xf]
    %v1087 = vld [vmem:[#allocation15 + $0x4] sm:$0xf]
    %v1088 = vld [vmem:[#allocation15 + $0x8] sm:$0xf]
    %v1089 = vld [vmem:[#allocation15 + $0xc] sm:$0xf]
    %v1090 = vld [vmem:[#allocation15 + $0x10] sm:$0xf]
    %v1091 = vld [vmem:[#allocation15 + $0x14] sm:$0xf]
    %v1092 = vld [vmem:[#allocation15 + $0x18] sm:$0xf]
    %v1093 = vld [vmem:[#allocation15 + $0x1c] sm:$0xf]
    %v1094 = vld [vmem:[#allocation15 + $0x20] sm:$0xf]
    %v1095 = vld [vmem:[#allocation15 + $0x24] sm:$0xf]
    %v1096 = vld [vmem:[#allocation15 + $0x28] sm:$0xf]
    %v1097 = vld [vmem:[#allocation15 + $0x2c] sm:$0xf]
    %v1098 = vld [vmem:[#allocation15 + $0x30] sm:$0xf]
    %v1099 = vld [vmem:[#allocation15 + $0x34] sm:$0xf]
    %v1100 = vld [vmem:[#allocation15 + $0x38] sm:$0xf]
    %v1101 = vld [vmem:[#allocation15 + $0x3c] sm:$0xf]
    %v1118 = vunpack.c.l.b16 %v1086
    %v1119 = vunpack.c.l.b16 %v1087
    %v1120 = vunpack.c.l.b16 %v1088
    %v1121 = vunpack.c.l.b16 %v1089
    %v1122 = vunpack.c.l.b16 %v1090
    %v1123 = vunpack.c.l.b16 %v1091
    %v1124 = vunpack.c.l.b16 %v1092
    %v1125 = vunpack.c.l.b16 %v1093
    %v1126 = vunpack.c.l.b16 %v1094
    %v1127 = vunpack.c.l.b16 %v1095
    %v1128 = vunpack.c.l.b16 %v1096
    %v1129 = vunpack.c.l.b16 %v1097
    %v1130 = vunpack.c.l.b16 %v1098
    %v1131 = vunpack.c.l.b16 %v1099
    %v1132 = vunpack.c.l.b16 %v1100
    %v1133 = vunpack.c.l.b16 %v1101
    %v1134 = vpack.c.b16 %v1119, %v1118
    %v1135 = vpack.c.b16 %v1121, %v1120
    %v1136 = vpack.c.b16 %v1123, %v1122
    %v1137 = vpack.c.b16 %v1125, %v1124
    %v1138 = vpack.c.b16 %v1127, %v1126
    %v1139 = vpack.c.b16 %v1129, %v1128
    %v1140 = vpack.c.b16 %v1131, %v1130
    %v1141 = vpack.c.b16 %v1133, %v1132
    %1150 = vmatprep.subr.bf16.mxu0 0
    %1151 = vmatpush1.bf16.msra.mxu0 %v1141
    %1152 = vmatprep.subr.bf16.mxu0 0
    %1153 = vmatpush1.bf16.msra.mxu0 %v1140
    %1154 = vmatprep.subr.bf16.mxu0 0
    %1155 = vmatpush1.bf16.msra.mxu0 %v1139
    %1156 = vmatprep.subr.bf16.mxu0 0
    %1157 = vmatpush1.bf16.msra.mxu0 %v1138
    %1158 = vmatprep.subr.bf16.mxu0 0
    %1159 = vmatpush1.bf16.msra.mxu0 %v1137
    %1160 = vmatprep.subr.bf16.mxu0 0
    %1161 = vmatpush1.bf16.msra.mxu0 %v1136
    %1162 = vmatprep.subr.bf16.mxu0 0
    %1163 = vmatpush1.bf16.msra.mxu0 %v1135
    %1164 = vmatprep.subr.bf16.mxu0 0
    %1165 = vmatpush1.bf16.msra.mxu0 %v1134
    %1166 = vmatprep.subr.bf16.mxu0 0
    %1167 = vmatpush2.bf16.msra.mxu0 0
    %1168 = vmatprep.subr.bf16.mxu0 0
    %1169 = vmatpush2.bf16.msra.mxu0 0
    %1170 = vmatprep.subr.bf16.mxu0 0
    %1171 = vmatpush2.bf16.msra.mxu0 0
    %1172 = vmatprep.subr.bf16.mxu0 0
    %1173 = vmatpush2.bf16.msra.mxu0 0
    %1174 = vmatprep.subr.bf16.mxu0 0
    %1175 = vmatpush2.bf16.msra.mxu0 0
    %1176 = vmatprep.subr.bf16.mxu0 0
    %1177 = vmatpush2.bf16.msra.mxu0 0
    %1178 = vmatprep.subr.bf16.mxu0 0
    %1179 = vmatpush2.bf16.msra.mxu0 0
    %1180 = vmatprep.subr.bf16.mxu0 0
    %1181 = vmatpush2.bf16.msra.mxu0 0
    %1182 = vmatprep.mubr.bf16.mxu0 0
    %1183 = vmatmul.mubr.bf16.gmra.mxu0 %v1078
    %v1184 = vpop.f32.mrf.mxu0
    %v1185 = vadd.f32 0.0, %v1184
    %v1186 = vpop.f32.mrf.mxu0
    %v1187 = vpop.f32.mrf.mxu0
    %v1188 = vadd.f32 0.0, %v1187
    %v1189 = vpop.f32.mrf.mxu0
    %1190 = vmatprep.mubr.bf16.mxu0 0
    %1191 = vmatmul.mubr.bf16.gmra.mxu0 %v1079
    %v1192 = vpop.f32.mrf.mxu0
    %v1193 = vadd.f32 0.0, %v1192
    %v1194 = vpop.f32.mrf.mxu0
    %v1195 = vpop.f32.mrf.mxu0
    %v1196 = vadd.f32 0.0, %v1195
    %v1197 = vpop.f32.mrf.mxu0
    %1198 = vmatprep.mubr.bf16.mxu0 0
    %1199 = vmatmul.mubr.bf16.gmra.mxu0 %v1080
    %v1200 = vpop.f32.mrf.mxu0
    %v1201 = vadd.f32 0.0, %v1200
    %v1202 = vpop.f32.mrf.mxu0
    %v1203 = vpop.f32.mrf.mxu0
    %v1204 = vadd.f32 0.0, %v1203
    %v1205 = vpop.f32.mrf.mxu0
    %1206 = vmatprep.mubr.bf16.mxu0 0
    %1207 = vmatmul.mubr.bf16.gmra.mxu0 %v1081
    %v1208 = vpop.f32.mrf.mxu0
    %v1209 = vadd.f32 0.0, %v1208
    %v1210 = vpop.f32.mrf.mxu0
    %v1211 = vpop.f32.mrf.mxu0
    %v1212 = vadd.f32 0.0, %v1211
    %v1213 = vpop.f32.mrf.mxu0
    %1214 = vmatprep.mubr.bf16.mxu0 0
    %1215 = vmatmul.mubr.bf16.gmra.mxu0 %v1082
    %v1216 = vpop.f32.mrf.mxu0
    %v1217 = vadd.f32 0.0, %v1216
    %v1218 = vpop.f32.mrf.mxu0
    %v1219 = vpop.f32.mrf.mxu0
    %v1220 = vadd.f32 0.0, %v1219
    %v1221 = vpop.f32.mrf.mxu0
    %1222 = vmatprep.mubr.bf16.mxu0 0
    %1223 = vmatmul.mubr.bf16.gmra.mxu0 %v1083
    %v1224 = vpop.f32.mrf.mxu0
    %v1225 = vadd.f32 0.0, %v1224
    %v1226 = vpop.f32.mrf.mxu0
    %v1227 = vpop.f32.mrf.mxu0
    %v1228 = vadd.f32 0.0, %v1227
    %v1229 = vpop.f32.mrf.mxu0
    %1230 = vmatprep.mubr.bf16.mxu0 0
    %1231 = vmatmul.mubr.bf16.gmra.mxu0 %v1084
    %v1232 = vpop.f32.mrf.mxu0
    %v1233 = vadd.f32 0.0, %v1232
    %v1234 = vpop.f32.mrf.mxu0
    %v1235 = vpop.f32.mrf.mxu0
    %v1236 = vadd.f32 0.0, %v1235
    %v1237 = vpop.f32.mrf.mxu0
    %1238 = vmatprep.mubr.bf16.mxu0 0
    %1239 = vmatmul.mubr.bf16.gmra.mxu0 %v1085
    %v1240 = vpop.f32.mrf.mxu0
    %v1241 = vadd.f32 0.0, %v1240
    %v1242 = vpop.f32.mrf.mxu0
    %v1243 = vpop.f32.mrf.mxu0
    %v1244 = vadd.f32 0.0, %v1243
    %v1245 = vpop.f32.mrf.mxu0
    %1246 = vdwg.mxu0
    %v1247 = vadd.f32 %v1062, %v1185
    %v1248 = vadd.f32 %v1063, %v1188
    %v1249 = vadd.f32 %v1064, %v1193
    %v1250 = vadd.f32 %v1065, %v1196
    %v1251 = vadd.f32 %v1066, %v1201
    %v1252 = vadd.f32 %v1067, %v1204
    %v1253 = vadd.f32 %v1068, %v1209
    %v1254 = vadd.f32 %v1069, %v1212
    %v1255 = vadd.f32 %v1070, %v1217
    %v1256 = vadd.f32 %v1071, %v1220
    %v1257 = vadd.f32 %v1072, %v1225
    %v1258 = vadd.f32 %v1073, %v1228
    %v1259 = vadd.f32 %v1074, %v1233
    %v1260 = vadd.f32 %v1075, %v1236
    %v1261 = vadd.f32 %v1076, %v1241
    %v1262 = vadd.f32 %v1077, %v1244
    %1263 = vst [vmem:[#allocation2] sm:$0xff] %v1247
    %1264 = vst [vmem:[#allocation2 + $0x8] sm:$0xff] %v1248
    %1265 = vst [vmem:[#allocation2 + $0x10] sm:$0xff] %v1249
    %1266 = vst [vmem:[#allocation2 + $0x18] sm:$0xff] %v1250
    %1267 = vst [vmem:[#allocation2 + $0x20] sm:$0xff] %v1251
    %1268 = vst [vmem:[#allocation2 + $0x28] sm:$0xff] %v1252
    %1269 = vst [vmem:[#allocation2 + $0x30] sm:$0xff] %v1253
    %1270 = vst [vmem:[#allocation2 + $0x38] sm:$0xff] %v1254
    %1271 = vst [vmem:[#allocation2 + $0x40] sm:$0xff] %v1255
    %1272 = vst [vmem:[#allocation2 + $0x48] sm:$0xff] %v1256
    %1273 = vst [vmem:[#allocation2 + $0x50] sm:$0xff] %v1257
    %1274 = vst [vmem:[#allocation2 + $0x58] sm:$0xff] %v1258
    %1275 = vst [vmem:[#allocation2 + $0x60] sm:$0xff] %v1259
    %1276 = vst [vmem:[#allocation2 + $0x68] sm:$0xff] %v1260
    %1277 = vst [vmem:[#allocation2 + $0x70] sm:$0xff] %v1261
    %1278 = vst [vmem:[#allocation2 + $0x78] sm:$0xff] %v1262
    // Predicated region
    $region74: #{tpu_custom_call.1} parent=1 // pred_check
      %p1279 = pneg %p143
    $region75: #{tpu_custom_call.1} parent=1 // pred_check_branch
      %1281 = sbr.rel (%p1279) target = $region77
    $region76: #{tpu_custom_call.1} parent=1 // pred_region
      %v1282 = vld [vmem:[#allocation2] sm:$0xff]
      %v1283 = vld [vmem:[#allocation2 + $0x8] sm:$0xff]
      %v1284 = vld [vmem:[#allocation2 + $0x10] sm:$0xff]
      %v1285 = vld [vmem:[#allocation2 + $0x18] sm:$0xff]
      %v1286 = vld [vmem:[#allocation2 + $0x20] sm:$0xff]
      %v1287 = vld [vmem:[#allocation2 + $0x28] sm:$0xff]
      %v1288 = vld [vmem:[#allocation2 + $0x30] sm:$0xff]
      %v1289 = vld [vmem:[#allocation2 + $0x38] sm:$0xff]
      %v1290 = vld [vmem:[#allocation2 + $0x40] sm:$0xff]
      %v1291 = vld [vmem:[#allocation2 + $0x48] sm:$0xff]
      %v1292 = vld [vmem:[#allocation2 + $0x50] sm:$0xff]
      %v1293 = vld [vmem:[#allocation2 + $0x58] sm:$0xff]
      %v1294 = vld [vmem:[#allocation2 + $0x60] sm:$0xff]
      %v1295 = vld [vmem:[#allocation2 + $0x68] sm:$0xff]
      %v1296 = vld [vmem:[#allocation2 + $0x70] sm:$0xff]
      %v1297 = vld [vmem:[#allocation2 + $0x78] sm:$0xff]
      %v1298 = vmax.f32 %v1282, 0.0
      %v1299 = vmax.f32 %v1283, 0.0
      %v1300 = vmax.f32 %v1284, 0.0
      %v1301 = vmax.f32 %v1285, 0.0
      %v1302 = vmax.f32 %v1286, 0.0
      %v1303 = vmax.f32 %v1287, 0.0
      %v1304 = vmax.f32 %v1288, 0.0
      %v1305 = vmax.f32 %v1289, 0.0
      %v1306 = vmax.f32 %v1290, 0.0
      %v1307 = vmax.f32 %v1291, 0.0
      %v1308 = vmax.f32 %v1292, 0.0
      %v1309 = vmax.f32 %v1293, 0.0
      %v1310 = vmax.f32 %v1294, 0.0
      %v1311 = vmax.f32 %v1295, 0.0
      %v1312 = vmax.f32 %v1296, 0.0
      %v1313 = vmax.f32 %v1297, 0.0
      %v1314 = vpack.c.bf16 %v1299, %v1298
      %v1315 = vpack.c.bf16 %v1301, %v1300
      %v1316 = vpack.c.bf16 %v1303, %v1302
      %v1317 = vpack.c.bf16 %v1305, %v1304
      %v1318 = vpack.c.bf16 %v1307, %v1306
      %v1319 = vpack.c.bf16 %v1309, %v1308
      %v1320 = vpack.c.bf16 %v1311, %v1310
      %v1321 = vpack.c.bf16 %v1313, %v1312
      %v1330 = vunpack.c.l.b16 %v1314
      %v1331 = vunpack.c.h.b16 %v1314
      %v1332 = vunpack.c.l.b16 %v1315
      %v1333 = vunpack.c.h.b16 %v1315
      %v1334 = vunpack.c.l.b16 %v1316
      %v1335 = vunpack.c.h.b16 %v1316
      %v1336 = vunpack.c.l.b16 %v1317
      %v1337 = vunpack.c.h.b16 %v1317
      %v1338 = vunpack.c.l.b16 %v1318
      %v1339 = vunpack.c.h.b16 %v1318
      %v1340 = vunpack.c.l.b16 %v1319
      %v1341 = vunpack.c.h.b16 %v1319
      %v1342 = vunpack.c.l.b16 %v1320
      %v1343 = vunpack.c.h.b16 %v1320
      %v1344 = vunpack.c.l.b16 %v1321
      %v1345 = vunpack.c.h.b16 %v1321
      %v1346 = vpack.c.b16 %v1330, %v1330
      %v1347 = vpack.c.b16 %v1331, %v1331
      %v1348 = vpack.c.b16 %v1332, %v1332
      %v1349 = vpack.c.b16 %v1333, %v1333
      %v1350 = vpack.c.b16 %v1334, %v1334
      %v1351 = vpack.c.b16 %v1335, %v1335
      %v1352 = vpack.c.b16 %v1336, %v1336
      %v1353 = vpack.c.b16 %v1337, %v1337
      %v1354 = vpack.c.b16 %v1338, %v1338
      %v1355 = vpack.c.b16 %v1339, %v1339
      %v1356 = vpack.c.b16 %v1340, %v1340
      %v1357 = vpack.c.b16 %v1341, %v1341
      %v1358 = vpack.c.b16 %v1342, %v1342
      %v1359 = vpack.c.b16 %v1343, %v1343
      %v1360 = vpack.c.b16 %v1344, %v1344
      %v1361 = vpack.c.b16 %v1345, %v1345
      %1378 = vst [vmem:[#allocation17] sm:$0xf] %v1346
      %1379 = vst [vmem:[#allocation17 + $0x4] sm:$0xf] %v1347
      %1380 = vst [vmem:[#allocation17 + $0x8] sm:$0xf] %v1348
      %1381 = vst [vmem:[#allocation17 + $0xc] sm:$0xf] %v1349
      %1382 = vst [vmem:[#allocation17 + $0x10] sm:$0xf] %v1350
      %1383 = vst [vmem:[#allocation17 + $0x14] sm:$0xf] %v1351
      %1384 = vst [vmem:[#allocation17 + $0x18] sm:$0xf] %v1352
      %1385 = vst [vmem:[#allocation17 + $0x1c] sm:$0xf] %v1353
      %1386 = vst [vmem:[#allocation17 + $0x20] sm:$0xf] %v1354
      %1387 = vst [vmem:[#allocation17 + $0x24] sm:$0xf] %v1355
      %1388 = vst [vmem:[#allocation17 + $0x28] sm:$0xf] %v1356
      %1389 = vst [vmem:[#allocation17 + $0x2c] sm:$0xf] %v1357
      %1390 = vst [vmem:[#allocation17 + $0x30] sm:$0xf] %v1358
      %1391 = vst [vmem:[#allocation17 + $0x34] sm:$0xf] %v1359
      %1392 = vst [vmem:[#allocation17 + $0x38] sm:$0xf] %v1360
      %1393 = vst [vmem:[#allocation17 + $0x3c] sm:$0xf] %v1361
    $region77: #{tpu_custom_call.1} parent=1 // pred_fallthru
      _
    // Predicated region
    $region78: #{tpu_custom_call.1} parent=1 // pred_check
      _
    $region79: #{tpu_custom_call.1} parent=1 // pred_check_branch
      %1395 = sbr.rel (0) target = $region81
    $region80: #{tpu_custom_call.1} parent=1 // pred_region
      %s1397 = ssub.s32 1024, 1024
      %1398 = vsyncadd [#allocation5], %s1397
      %s1399 = sshll.u32 [#allocation17], 4
      %s1400 = int_to_ptr.vmem [resolvable:$true] %s1399
      %1405 = dma.vmem_to_hbm [thread:$0]  %s1400, 1024, %s9, [#allocation5], 64, 64, 4
    $region81: #{tpu_custom_call.1} parent=1 // pred_fallthru
      _
    // Predicated region
    $region82: #{tpu_custom_call.1} parent=1 // pred_check
      _
    $region83: #{tpu_custom_call.1} parent=1 // pred_check_branch
      %1407 = sbr.rel (0) target = $region85
    $region84: #{tpu_custom_call.1} parent=1 // pred_region
      %1408 = dma.done [#allocation5], 1024
    $region85: #{tpu_custom_call.1} parent=1 // pred_fallthru
      _
    %1409 = vsyncpa [#allocation4], 1
    %1410 = vsyncpa [#allocation7], 1
    %1411 = vsyncpa [#allocation10], 1
    %1412 = vsyncpa [#allocation13], 1
    %1413 = vsyncpa [#allocation16], 1
    %1414 = vsyncpa [#allocation5], 1

</llo_original>
